<compile_context>
chip_gen: v5e
topology: v5e:2x2
jax: 0.10.0
libtpu: 0.0.40
codegen_flags: <defaults>
</compile_context>

<pallas_src>
import jax
import jax.numpy as jnp
import numpy as np
from jax import lax
from jax.experimental import pallas as pl
from jax.experimental.pallas import tpu as pltpu

C_PAD = 128          # lane-dense padded output channel count (real Cout = 66)
BN_EPS = 1e-5
MAX_B_TILE = 64      # images per grid step; blocks + intermediates stay well inside
                     # the default scoped VMEM on v5e/v6e/v7x.


# ----------------------------------------------------------------------------
# In-kernel slab helpers (operate on traced channels-last values)
# ----------------------------------------------------------------------------
def _pad_w(x, pw):
    if pw == 0:
        return x
    B, H, W, C = x.shape
    z = jnp.zeros((B, H, pw, C), x.dtype)
    return jnp.concatenate([z, x, z], axis=2)


def _pad_h(x, ph):
    if ph == 0:
        return x
    B, H, W, C = x.shape
    z = jnp.zeros((B, ph, W, C), x.dtype)
    return jnp.concatenate([z, x, z], axis=1)


def _w_taps_cat(xp, kw, wout):
    """Concatenate kw width-tap shifts of xp (B, H, W+2p, C) along channels."""
    return jnp.concatenate([xp[:, :, j:j + wout, :] for j in range(kw)], axis=-1)


def _conv3x3_s2(x, w2d):
    """3x3 conv, stride (2,1), padding (1,1), folded-BN + ReLU, bf16 out.

    x   : (B, Hin, W, C) bf16, Hin even.
    w2d : (3*3*C, Cout)  bf16, rows ordered (kw, kh, cin) -- BN scale folded in.
    """
    B, Hin, W, C = x.shape
    Ho = Hin // 2
    xp = _pad_h(_pad_w(x, 1), 1)                         # (B, Hin+2, W+2, C)
    # Even/odd row split: stride-2 H taps become plain unit-stride slices.
    xr = xp.reshape(B, (Hin + 2) // 2, 2, W + 2, C)
    ev, od = xr[:, :, 0], xr[:, :, 1]                    # (B, (Hin+2)//2, W+2, C)
    # H taps i = 0,1,2  ->  ev[:, :Ho], od[:, :Ho], ev[:, 1:Ho+1]
    yh = jnp.concatenate([ev[:, :Ho], od[:, :Ho], ev[:, 1:Ho + 1]], axis=-1)
    col = _w_taps_cat(yh, 3, W)                          # (B, Ho, W, 9*C)
    cout = w2d.shape[-1]
    y = jnp.dot(col.reshape(B * Ho * W, 9 * C), w2d,
                preferred_element_type=jnp.float32)      # one MXU slab matmul
    y = jnp.maximum(y, 0.0)
    return y.astype(jnp.bfloat16).reshape(B, Ho, W, cout)


def _conv1x3(x, w2d):
    """1x3 conv, stride 1, padding (0,1), folded-BN + ReLU, bf16 out."""
    B, H, W, C = x.shape
    col = _w_taps_cat(_pad_w(x, 1), 3, W)                # (B, H, W, 3*C)
    cout = w2d.shape[-1]
    y = jnp.dot(col.reshape(B * H * W, 3 * C), w2d,
                preferred_element_type=jnp.float32)
    y = jnp.maximum(y, 0.0)
    return y.astype(jnp.bfloat16).reshape(B, H, W, cout)


# ----------------------------------------------------------------------------
# Fused 4-layer kernel: one batch tile per grid step
# ----------------------------------------------------------------------------
def _ocr_header_kernel(x_ref, w1_ref, w2_ref, w3_ref, w4_ref, b4_ref, o_ref):
    x = x_ref[...]                                       # (B, H, W, Cin) bf16
    x = _conv3x3_s2(x, w1_ref[...])                      # (B, H/2, W, Cin)
    x = _conv3x3_s2(x, w2_ref[...])                      # (B, H/4, W, Cin)
    x = _conv1x3(x, w3_ref[...])                         # (B, H/4, W, 120)
    # conv4: 1x1 + bias, no BN/ReLU; Cout zero-padded to 128 lanes, f32 out.
    # (bf16 operands / f32 accumulate; keep f32 output to match the module.)
    B, Ho, Wo, C = x.shape
    y = jnp.dot(x.reshape(B * Ho * Wo, C), w4_ref[...],
                preferred_element_type=jnp.float32) + b4_ref[...]
    o_ref[...] = y.reshape(B, Ho, Wo, C_PAD)             # lane-dense stores


# ----------------------------------------------------------------------------
# Parameters (kaiming-normal fan_out like the PyTorch __init__) + one-time prep
# ----------------------------------------------------------------------------
def _kaiming_fan_out(key, cout, cin, kh, kw):
    fan_out = cout * kh * kw
    std = np.sqrt(2.0 / fan_out)
    return jax.random.normal(key, (cout, cin, kh, kw), dtype=jnp.float32) * std


def make_ocr_header_params(in_channel, key):
    """Raw (PyTorch-equivalent) parameters: OIHW conv weights + conv4 bias."""
    k1, k2, k3, k4 = jax.random.split(key, 4)
    return {
        "w1": _kaiming_fan_out(k1, in_channel, in_channel, 3, 3),
        "w2": _kaiming_fan_out(k2, in_channel, in_channel, 3, 3),
        "w3": _kaiming_fan_out(k3, 120, in_channel, 1, 3),
        "w4": _kaiming_fan_out(k4, 66, 120, 1, 1),
        "b4": jnp.zeros((66,), jnp.float32),             # nn.init.zeros_ on bias
    }


def prepare_fused_weights(params):
    """One-time prep: OIHW -> 2D (kw*kh*Cin, Cout) slabs, eval-BN fold, bf16 cast,
    conv4 channel padding to 128 lanes for dense output stores."""
    bn_scale = 1.0 / np.sqrt(1.0 + BN_EPS)   # gamma=1, beta=0, mean=0, var=1 (eval BN)

    def slab(w_oihw, scale):
        cout, cin, kh, kw = w_oihw.shape
        # row index = j*(kh*cin) + i*cin + ci  (matches in-kernel concat order)
        w = jnp.transpose(w_oihw, (3, 2, 1, 0)).reshape(kh * kw * cin, cout)
        return (w * scale).astype(jnp.bfloat16)

    w1 = slab(params["w1"], bn_scale)                               # (36, Cin)
    w2 = slab(params["w2"], bn_scale)                               # (36, Cin)
    w3 = slab(params["w3"], bn_scale)                               # (12, 120)
    w4 = jnp.pad(slab(params["w4"], 1.0), ((0, 0), (0, C_PAD - 66)))  # (120, 128)
    b4 = jnp.pad(params["b4"], (0, C_PAD - 66)).reshape(1, C_PAD).astype(jnp.float32)
    return (w1, w2, w3, w4, b4)


# ----------------------------------------------------------------------------
# Forward (accepts NCHW like the PyTorch module, returns NCHW)
# ----------------------------------------------------------------------------
def ocr_header_forward(fused_weights, x_nchw):
    w1, w2, w3, w4, b4 = fused_weights
    N, Cin, H, W = x_nchw.shape
    assert H % 4 == 0, "two stride-2 layers need H divisible by 4"

    # TODO(synk): for production, accept NHWC/bf16 from the producer and hand the
    # padded channels-last output straight to the consumer to drop these extra
    # wrapper-side relayout passes.
    x = jnp.transpose(x_nchw, (0, 2, 3, 1)).astype(jnp.bfloat16)    # NHWC, bf16

    b_tile = min(N, MAX_B_TILE)
    n_pad = (-N) % b_tile
    if n_pad:
        x = jnp.pad(x, ((0, n_pad), (0, 0), (0, 0), (0, 0)))
    n_total = N + n_pad

    Ho, Wo = H // 4, W                     # after two stride-(2,1) layers

    out = pl.pallas_call(
        _ocr_header_kernel,
        out_shape=jax.ShapeDtypeStruct((n_total, Ho, Wo, C_PAD), jnp.float32),
        grid=(n_total // b_tile,),
        in_specs=[
            pl.BlockSpec((b_tile, H, W, Cin), lambda n: (n, 0, 0, 0)),
            pl.BlockSpec(w1.shape, lambda n: (0, 0)),
            pl.BlockSpec(w2.shape, lambda n: (0, 0)),
            pl.BlockSpec(w3.shape, lambda n: (0, 0)),
            pl.BlockSpec(w4.shape, lambda n: (0, 0)),
            pl.BlockSpec(b4.shape, lambda n: (0, 0)),
        ],
        out_specs=pl.BlockSpec((b_tile, Ho, Wo, C_PAD), lambda n: (n, 0, 0, 0)),
        compiler_params=pltpu.CompilerParams(
            # TODO(synk): switch to pltpu.CORE_PARALLEL on v7x (2 TCs/chip).
            dimension_semantics=("parallel",)),
    )(x, w1, w2, w3, w4, b4)

    out = out[:N, :, :, :66]                              # drop pad batch / lanes
    return jnp.transpose(out, (0, 3, 1, 2))               # -> NCHW


# ----------------------------------------------------------------------------
# Pure-JAX reference (lax.conv, f32, module-faithful) for correctness check
# ----------------------------------------------------------------------------
def _ref_conv(x_nchw, w_oihw, stride, pad):
    return lax.conv_general_dilated(
        x_nchw, w_oihw, window_strides=stride,
        padding=[(pad[0], pad[0]), (pad[1], pad[1])],
        dimension_numbers=("NCHW", "OIHW", "NCHW"))


def ocr_header_reference(params, x_nchw):
    s = 1.0 / np.sqrt(1.0 + BN_EPS)
    x = jax.nn.relu(_ref_conv(x_nchw, params["w1"], (2, 1), (1, 1)) * s)
    x = jax.nn.relu(_ref_conv(x, params["w2"], (2, 1), (1, 1)) * s)
    x = jax.nn.relu(_ref_conv(x, params["w3"], (1, 1), (0, 1)) * s)
    x = _ref_conv(x, params["w4"], (1, 1), (0, 0)) + params["b4"].reshape(1, 66, 1, 1)
    return x


if __name__ == "__main__":
    key = jax.random.PRNGKey(0)
    kx, kp = jax.random.split(key)

    in_channel = 4
    x = jax.random.normal(kx, (2, in_channel, 16, 16), dtype=jnp.float32)  # NCHW

    raw_params = make_ocr_header_params(in_channel, kp)
    fused_weights = prepare_fused_weights(raw_params)     # precomputed once

    fwd = jax.jit(ocr_header_forward)
    out = jax.block_until_ready(fwd(fused_weights, x))
    assert out.shape == (2, 66, 4, 16), out.shape

    ref = jax.block_until_ready(ocr_header_reference(raw_params, x))
    # bf16 MXU operands / bf16 intermediate activations -> looser tolerance.
    np.testing.assert_allclose(np.asarray(out), np.asarray(ref),
                               rtol=3e-2, atol=3e-2)

    print("KERNEL_OK")
</pallas_src>

<mosaic_0001>
module attributes {stable_mosaic.version = 11 : i64} {
  func.func @_ocr_header_kernel(%arg0: i32, %arg1: memref<2x16x16x4xbf16, #tpu.memory_space<vmem>>, %arg2: memref<36x4xbf16, #tpu.memory_space<vmem>>, %arg3: memref<36x4xbf16, #tpu.memory_space<vmem>>, %arg4: memref<12x120xbf16, #tpu.memory_space<vmem>>, %arg5: memref<120x128xbf16, #tpu.memory_space<vmem>>, %arg6: memref<1x128xf32, #tpu.memory_space<vmem>>, %arg7: memref<2x4x16x128xf32, #tpu.memory_space<vmem>>) attributes {dimension_semantics = [#tpu.dimension_semantics<parallel>], iteration_bounds = array<i64: 1>, scalar_prefetch = 0 : i64, scratch_operands = 0 : i64, tpu.core_type = #tpu.core_type<tc>, window_params = [{transform_indices = @transform_0, window_bounds = array<i64: 2, 16, 16, 4>}, {pipeline_mode = #tpu.pipeline_mode<synchronous>, transform_indices = @transform_1, window_bounds = array<i64: 36, 4>}, {pipeline_mode = #tpu.pipeline_mode<synchronous>, transform_indices = @transform_2, window_bounds = array<i64: 36, 4>}, {pipeline_mode = #tpu.pipeline_mode<synchronous>, transform_indices = @transform_3, window_bounds = array<i64: 12, 120>}, {pipeline_mode = #tpu.pipeline_mode<synchronous>, transform_indices = @transform_4, window_bounds = array<i64: 120, 128>}, {pipeline_mode = #tpu.pipeline_mode<synchronous>, transform_indices = @transform_5, window_bounds = array<i64: 1, 128>}, {transform_indices = @transform_6, window_bounds = array<i64: 2, 4, 16, 128>}]} {
    %c0 = arith.constant 0 : index
    %c0_0 = arith.constant 0 : index
    %c0_1 = arith.constant 0 : index
    %c0_2 = arith.constant 0 : index
    %0 = vector.load %arg1[%c0, %c0_0, %c0_1, %c0_2] : memref<2x16x16x4xbf16, #tpu.memory_space<vmem>>, vector<2x16x16x4xbf16>
    %c0_3 = arith.constant 0 : index
    %c0_4 = arith.constant 0 : index
    %1 = vector.load %arg2[%c0_3, %c0_4] : memref<36x4xbf16, #tpu.memory_space<vmem>>, vector<36x4xbf16>
    %cst = arith.constant 0.000000e+00 : bf16
    %2 = vector.broadcast %cst : bf16 to vector<2x16x1x4xbf16>
    %3 = tpu.concatenate %2, %0, %2 in 2 : vector<2x16x1x4xbf16>, vector<2x16x16x4xbf16>, vector<2x16x1x4xbf16> -> vector<2x16x18x4xbf16>
    %cst_5 = arith.constant 0.000000e+00 : bf16
    %4 = vector.broadcast %cst_5 : bf16 to vector<2x1x18x4xbf16>
    %5 = tpu.concatenate %4, %3, %4 in 1 : vector<2x1x18x4xbf16>, vector<2x16x18x4xbf16>, vector<2x1x18x4xbf16> -> vector<2x18x18x4xbf16>
    %6 = vector.shape_cast %5 : vector<2x18x18x4xbf16> to vector<2x9x2x18x4xbf16>
    %7 = vector.extract_strided_slice %6 {offsets = [0, 0, 0, 0, 0], sizes = [2, 9, 1, 18, 4], strides = [1, 1, 1, 1, 1]} : vector<2x9x2x18x4xbf16> to vector<2x9x1x18x4xbf16>
    %8 = vector.shape_cast %7 : vector<2x9x1x18x4xbf16> to vector<2x9x18x4xbf16>
    %9 = vector.extract_strided_slice %6 {offsets = [0, 0, 1, 0, 0], sizes = [2, 9, 1, 18, 4], strides = [1, 1, 1, 1, 1]} : vector<2x9x2x18x4xbf16> to vector<2x9x1x18x4xbf16>
    %10 = vector.shape_cast %9 : vector<2x9x1x18x4xbf16> to vector<2x9x18x4xbf16>
    %11 = vector.extract_strided_slice %8 {offsets = [0, 0, 0, 0], sizes = [2, 8, 18, 4], strides = [1, 1, 1, 1]} : vector<2x9x18x4xbf16> to vector<2x8x18x4xbf16>
    %12 = vector.extract_strided_slice %10 {offsets = [0, 0, 0, 0], sizes = [2, 8, 18, 4], strides = [1, 1, 1, 1]} : vector<2x9x18x4xbf16> to vector<2x8x18x4xbf16>
    %13 = vector.extract_strided_slice %8 {offsets = [0, 1, 0, 0], sizes = [2, 8, 18, 4], strides = [1, 1, 1, 1]} : vector<2x9x18x4xbf16> to vector<2x8x18x4xbf16>
    %14 = tpu.concatenate %11, %12, %13 in 3 : vector<2x8x18x4xbf16>, vector<2x8x18x4xbf16>, vector<2x8x18x4xbf16> -> vector<2x8x18x12xbf16>
    %15 = vector.extract_strided_slice %14 {offsets = [0, 0, 0, 0], sizes = [2, 8, 16, 12], strides = [1, 1, 1, 1]} : vector<2x8x18x12xbf16> to vector<2x8x16x12xbf16>
    %16 = vector.extract_strided_slice %14 {offsets = [0, 0, 1, 0], sizes = [2, 8, 16, 12], strides = [1, 1, 1, 1]} : vector<2x8x18x12xbf16> to vector<2x8x16x12xbf16>
    %17 = vector.extract_strided_slice %14 {offsets = [0, 0, 2, 0], sizes = [2, 8, 16, 12], strides = [1, 1, 1, 1]} : vector<2x8x18x12xbf16> to vector<2x8x16x12xbf16>
    %18 = tpu.concatenate %15, %16, %17 in 3 : vector<2x8x16x12xbf16>, vector<2x8x16x12xbf16>, vector<2x8x16x12xbf16> -> vector<2x8x16x36xbf16>
    %19 = vector.shape_cast %18 : vector<2x8x16x36xbf16> to vector<256x36xbf16>
    %cst_6 = arith.constant dense<0.000000e+00> : vector<256x4xf32>
    %20 = tpu.matmul %19, %1, %cst_6 {dimension_numbers = #tpu.dot_dimension_numbers<[1], [0], [0], [1], [0, 0, 1, 1], [], []>} : vector<256x36xbf16>, vector<36x4xbf16>, vector<256x4xf32> -> vector<256x4xf32>
    %cst_7 = arith.constant 0.000000e+00 : f32
    %21 = vector.broadcast %cst_7 : f32 to vector<256x4xf32>
    %22 = arith.maximumf %20, %21 : vector<256x4xf32>
    %23 = arith.truncf %22 : vector<256x4xf32> to vector<256x4xbf16>
    %24 = vector.shape_cast %23 : vector<256x4xbf16> to vector<2x8x16x4xbf16>
    %c0_8 = arith.constant 0 : index
    %c0_9 = arith.constant 0 : index
    %25 = vector.load %arg3[%c0_8, %c0_9] : memref<36x4xbf16, #tpu.memory_space<vmem>>, vector<36x4xbf16>
    %cst_10 = arith.constant 0.000000e+00 : bf16
    %26 = vector.broadcast %cst_10 : bf16 to vector<2x8x1x4xbf16>
    %27 = tpu.concatenate %26, %24, %26 in 2 : vector<2x8x1x4xbf16>, vector<2x8x16x4xbf16>, vector<2x8x1x4xbf16> -> vector<2x8x18x4xbf16>
    %cst_11 = arith.constant 0.000000e+00 : bf16
    %28 = vector.broadcast %cst_11 : bf16 to vector<2x1x18x4xbf16>
    %29 = tpu.concatenate %28, %27, %28 in 1 : vector<2x1x18x4xbf16>, vector<2x8x18x4xbf16>, vector<2x1x18x4xbf16> -> vector<2x10x18x4xbf16>
    %30 = vector.shape_cast %29 : vector<2x10x18x4xbf16> to vector<2x5x2x18x4xbf16>
    %31 = vector.extract_strided_slice %30 {offsets = [0, 0, 0, 0, 0], sizes = [2, 5, 1, 18, 4], strides = [1, 1, 1, 1, 1]} : vector<2x5x2x18x4xbf16> to vector<2x5x1x18x4xbf16>
    %32 = vector.shape_cast %31 : vector<2x5x1x18x4xbf16> to vector<2x5x18x4xbf16>
    %33 = vector.extract_strided_slice %30 {offsets = [0, 0, 1, 0, 0], sizes = [2, 5, 1, 18, 4], strides = [1, 1, 1, 1, 1]} : vector<2x5x2x18x4xbf16> to vector<2x5x1x18x4xbf16>
    %34 = vector.shape_cast %33 : vector<2x5x1x18x4xbf16> to vector<2x5x18x4xbf16>
    %35 = vector.extract_strided_slice %32 {offsets = [0, 0, 0, 0], sizes = [2, 4, 18, 4], strides = [1, 1, 1, 1]} : vector<2x5x18x4xbf16> to vector<2x4x18x4xbf16>
    %36 = vector.extract_strided_slice %34 {offsets = [0, 0, 0, 0], sizes = [2, 4, 18, 4], strides = [1, 1, 1, 1]} : vector<2x5x18x4xbf16> to vector<2x4x18x4xbf16>
    %37 = vector.extract_strided_slice %32 {offsets = [0, 1, 0, 0], sizes = [2, 4, 18, 4], strides = [1, 1, 1, 1]} : vector<2x5x18x4xbf16> to vector<2x4x18x4xbf16>
    %38 = tpu.concatenate %35, %36, %37 in 3 : vector<2x4x18x4xbf16>, vector<2x4x18x4xbf16>, vector<2x4x18x4xbf16> -> vector<2x4x18x12xbf16>
    %39 = vector.extract_strided_slice %38 {offsets = [0, 0, 0, 0], sizes = [2, 4, 16, 12], strides = [1, 1, 1, 1]} : vector<2x4x18x12xbf16> to vector<2x4x16x12xbf16>
    %40 = vector.extract_strided_slice %38 {offsets = [0, 0, 1, 0], sizes = [2, 4, 16, 12], strides = [1, 1, 1, 1]} : vector<2x4x18x12xbf16> to vector<2x4x16x12xbf16>
    %41 = vector.extract_strided_slice %38 {offsets = [0, 0, 2, 0], sizes = [2, 4, 16, 12], strides = [1, 1, 1, 1]} : vector<2x4x18x12xbf16> to vector<2x4x16x12xbf16>
    %42 = tpu.concatenate %39, %40, %41 in 3 : vector<2x4x16x12xbf16>, vector<2x4x16x12xbf16>, vector<2x4x16x12xbf16> -> vector<2x4x16x36xbf16>
    %43 = vector.shape_cast %42 : vector<2x4x16x36xbf16> to vector<128x36xbf16>
    %cst_12 = arith.constant dense<0.000000e+00> : vector<128x4xf32>
    %44 = tpu.matmul %43, %25, %cst_12 {dimension_numbers = #tpu.dot_dimension_numbers<[1], [0], [0], [1], [0, 0, 1, 1], [], []>} : vector<128x36xbf16>, vector<36x4xbf16>, vector<128x4xf32> -> vector<128x4xf32>
    %cst_13 = arith.constant 0.000000e+00 : f32
    %45 = vector.broadcast %cst_13 : f32 to vector<128x4xf32>
    %46 = arith.maximumf %44, %45 : vector<128x4xf32>
    %47 = arith.truncf %46 : vector<128x4xf32> to vector<128x4xbf16>
    %48 = vector.shape_cast %47 : vector<128x4xbf16> to vector<2x4x16x4xbf16>
    %c0_14 = arith.constant 0 : index
    %c0_15 = arith.constant 0 : index
    %49 = vector.load %arg4[%c0_14, %c0_15] : memref<12x120xbf16, #tpu.memory_space<vmem>>, vector<12x120xbf16>
    %cst_16 = arith.constant 0.000000e+00 : bf16
    %50 = vector.broadcast %cst_16 : bf16 to vector<2x4x1x4xbf16>
    %51 = tpu.concatenate %50, %48, %50 in 2 : vector<2x4x1x4xbf16>, vector<2x4x16x4xbf16>, vector<2x4x1x4xbf16> -> vector<2x4x18x4xbf16>
    %52 = vector.extract_strided_slice %51 {offsets = [0, 0, 0, 0], sizes = [2, 4, 16, 4], strides = [1, 1, 1, 1]} : vector<2x4x18x4xbf16> to vector<2x4x16x4xbf16>
    %53 = vector.extract_strided_slice %51 {offsets = [0, 0, 1, 0], sizes = [2, 4, 16, 4], strides = [1, 1, 1, 1]} : vector<2x4x18x4xbf16> to vector<2x4x16x4xbf16>
    %54 = vector.extract_strided_slice %51 {offsets = [0, 0, 2, 0], sizes = [2, 4, 16, 4], strides = [1, 1, 1, 1]} : vector<2x4x18x4xbf16> to vector<2x4x16x4xbf16>
    %55 = tpu.concatenate %52, %53, %54 in 3 : vector<2x4x16x4xbf16>, vector<2x4x16x4xbf16>, vector<2x4x16x4xbf16> -> vector<2x4x16x12xbf16>
    %56 = vector.shape_cast %55 : vector<2x4x16x12xbf16> to vector<128x12xbf16>
    %cst_17 = arith.constant dense<0.000000e+00> : vector<128x120xf32>
    %57 = tpu.matmul %56, %49, %cst_17 {dimension_numbers = #tpu.dot_dimension_numbers<[1], [0], [0], [1], [0, 0, 1, 1], [], []>} : vector<128x12xbf16>, vector<12x120xbf16>, vector<128x120xf32> -> vector<128x120xf32>
    %cst_18 = arith.constant 0.000000e+00 : f32
    %58 = vector.broadcast %cst_18 : f32 to vector<128x120xf32>
    %59 = arith.maximumf %57, %58 : vector<128x120xf32>
    %60 = arith.truncf %59 : vector<128x120xf32> to vector<128x120xbf16>
    %61 = vector.shape_cast %60 : vector<128x120xbf16> to vector<2x4x16x120xbf16>
    %62 = vector.shape_cast %61 : vector<2x4x16x120xbf16> to vector<128x120xbf16>
    %c0_19 = arith.constant 0 : index
    %c0_20 = arith.constant 0 : index
    %63 = vector.load %arg5[%c0_19, %c0_20] : memref<120x128xbf16, #tpu.memory_space<vmem>>, vector<120x128xbf16>
    %cst_21 = arith.constant dense<0.000000e+00> : vector<128x128xf32>
    %64 = tpu.matmul %62, %63, %cst_21 {dimension_numbers = #tpu.dot_dimension_numbers<[1], [0], [0], [1], [0, 0, 1, 1], [], []>} : vector<128x120xbf16>, vector<120x128xbf16>, vector<128x128xf32> -> vector<128x128xf32>
    %c0_22 = arith.constant 0 : index
    %c0_23 = arith.constant 0 : index
    %65 = vector.load %arg6[%c0_22, %c0_23] : memref<1x128xf32, #tpu.memory_space<vmem>>, vector<1x128xf32>
    %66 = vector.broadcast %65 : vector<1x128xf32> to vector<128x128xf32>
    %67 = arith.addf %64, %66 : vector<128x128xf32>
    %68 = vector.shape_cast %67 : vector<128x128xf32> to vector<2x4x16x128xf32>
    %c0_24 = arith.constant 0 : index
    %c0_25 = arith.constant 0 : index
    %c0_26 = arith.constant 0 : index
    %c0_27 = arith.constant 0 : index
    %69 = vector.load %arg7[%c0_24, %c0_25, %c0_26, %c0_27] : memref<2x4x16x128xf32, #tpu.memory_space<vmem>>, vector<2x4x16x128xf32>
    tpu.vector_store %arg7[%c0_24, %c0_25, %c0_26, %c0_27], %68 {strides = array<i32>} : memref<2x4x16x128xf32, #tpu.memory_space<vmem>>, vector<2x4x16x128xf32>,
    return
  }
  func.func @transform_0(%arg0: i32) -> (i32, i32, i32, i32) {
    %c0_i32 = arith.constant 0 : i32
    %c0_i32_0 = arith.constant 0 : i32
    %c0_i32_1 = arith.constant 0 : i32
    %c0_i32_2 = arith.constant 0 : i32
    return %arg0, %c0_i32, %c0_i32_0, %c0_i32_1 : i32, i32, i32, i32
  }
  func.func @transform_1(%arg0: i32) -> (i32, i32) {
    %c0_i32 = arith.constant 0 : i32
    %c0_i32_0 = arith.constant 0 : i32
    %c0_i32_1 = arith.constant 0 : i32
    return %c0_i32, %c0_i32_0 : i32, i32
  }
  func.func @transform_2(%arg0: i32) -> (i32, i32) {
    %c0_i32 = arith.constant 0 : i32
    %c0_i32_0 = arith.constant 0 : i32
    %c0_i32_1 = arith.constant 0 : i32
    return %c0_i32, %c0_i32_0 : i32, i32
  }
  func.func @transform_3(%arg0: i32) -> (i32, i32) {
    %c0_i32 = arith.constant 0 : i32
    %c0_i32_0 = arith.constant 0 : i32
    %c0_i32_1 = arith.constant 0 : i32
    return %c0_i32, %c0_i32_0 : i32, i32
  }
  func.func @transform_4(%arg0: i32) -> (i32, i32) {
    %c0_i32 = arith.constant 0 : i32
    %c0_i32_0 = arith.constant 0 : i32
    %c0_i32_1 = arith.constant 0 : i32
    return %c0_i32, %c0_i32_0 : i32, i32
  }
  func.func @transform_5(%arg0: i32) -> (i32, i32) {
    %c0_i32 = arith.constant 0 : i32
    %c0_i32_0 = arith.constant 0 : i32
    %c0_i32_1 = arith.constant 0 : i32
    return %c0_i32, %c0_i32_0 : i32, i32
  }
  func.func @transform_6(%arg0: i32) -> (i32, i32, i32, i32) {
    %c0_i32 = arith.constant 0 : i32
    %c0_i32_0 = arith.constant 0 : i32
    %c0_i32_1 = arith.constant 0 : i32
    %c0_i32_2 = arith.constant 0 : i32
    return %arg0, %c0_i32, %c0_i32_0, %c0_i32_1 : i32, i32, i32, i32
  }
}

</mosaic_0001>

<llo_original>
// kernel: ocr_header_forward.1
$region0: #{ocr_header_forward.1}
  #allocation0 [shape = 'u32[]', space=smem, size = 0x4, offset = 0x4, fixed_abs, tag = 'smem constant byte address 0x4 - core index']
  #allocation1 [shape = 'u32[72,128]{1,0:T(1,128)}', space=vmem, size = 0x9000, scoped, tag = 'internal scratch']
  %s0 = inlined_call_operand.vmem [shape: bf16[2,16,16,4], index: 0, kind: input, shape index: {}]
  %s1 = inlined_call_operand.vmem [shape: bf16[36,4], index: 1, kind: input, shape index: {}]
  %s2 = inlined_call_operand.vmem [shape: bf16[36,4], index: 2, kind: input, shape index: {}]
  %s3 = inlined_call_operand.vmem [shape: bf16[12,120], index: 3, kind: input, shape index: {}]
  %s4 = inlined_call_operand.vmem [shape: bf16[120,128], index: 4, kind: input, shape index: {}]
  %s5 = inlined_call_operand.vmem [shape: f32[1,128], index: 5, kind: input, shape index: {}]
  %s6 = inlined_call_operand.vmem [shape: f32[2,4,16,128], index: 6, kind: output, shape index: {}]
  %s7 = sld [smem:[#allocation0]]
  $region34: #{ocr_header_forward.1} parent=0
    _
  %s9 = ssub.s32 1, %s7
  %s10 = scalar_select 0, %s9, %s7
  // Predicated region
  $region2: #{ocr_header_forward.1} parent=0 // pred_check
    _
  $region3: #{ocr_header_forward.1} parent=0 // pred_check_branch
    %12 = sbr.rel (0) target = $region5
  $region4: #{ocr_header_forward.1} parent=0 // pred_region
    _
  $region5: #{ocr_header_forward.1} parent=0 // pred_fallthru
    _
  // Predicated region
  $region6: #{ocr_header_forward.1} parent=0 // pred_check
    _
  $region7: #{ocr_header_forward.1} parent=0 // pred_check_branch
    %14 = sbr.rel (0) target = $region9
  $region8: #{ocr_header_forward.1} parent=0 // pred_region
    _
  $region9: #{ocr_header_forward.1} parent=0 // pred_fallthru
    _
  // Predicated region
  $region10: #{ocr_header_forward.1} parent=0 // pred_check
    _
  $region11: #{ocr_header_forward.1} parent=0 // pred_check_branch
    %16 = sbr.rel (0) target = $region13
  $region12: #{ocr_header_forward.1} parent=0 // pred_region
    _
  $region13: #{ocr_header_forward.1} parent=0 // pred_fallthru
    _
  // Predicated region
  $region14: #{ocr_header_forward.1} parent=0 // pred_check
    _
  $region15: #{ocr_header_forward.1} parent=0 // pred_check_branch
    %18 = sbr.rel (0) target = $region17
  $region16: #{ocr_header_forward.1} parent=0 // pred_region
    _
  $region17: #{ocr_header_forward.1} parent=0 // pred_fallthru
    _
  // Predicated region
  $region18: #{ocr_header_forward.1} parent=0 // pred_check
    _
  $region19: #{ocr_header_forward.1} parent=0 // pred_check_branch
    %20 = sbr.rel (0) target = $region21
  $region20: #{ocr_header_forward.1} parent=0 // pred_region
    _
  $region21: #{ocr_header_forward.1} parent=0 // pred_fallthru
    _
  // Predicated region
  $region22: #{ocr_header_forward.1} parent=0 // pred_check
    _
  $region23: #{ocr_header_forward.1} parent=0 // pred_check_branch
    %22 = sbr.rel (0) target = $region25
  $region24: #{ocr_header_forward.1} parent=0 // pred_region
    _
  $region25: #{ocr_header_forward.1} parent=0 // pred_fallthru
    _
  %v24 = vld [vmem:[%s0] sm:$0xf]
  %v25 = vld [vmem:[%s0 + $0x4] sm:$0xf]
  %v26 = vld [vmem:[%s0 + $0x8] sm:$0xf]
  %v27 = vld [vmem:[%s0 + $0xc] sm:$0xf]
  %v28 = vld [vmem:[%s0 + $0x10] sm:$0xf]
  %v29 = vld [vmem:[%s0 + $0x14] sm:$0xf]
  %v30 = vld [vmem:[%s0 + $0x18] sm:$0xf]
  %v31 = vld [vmem:[%s0 + $0x1c] sm:$0xf]
  %v32 = vld [vmem:[%s0 + $0x20] sm:$0xf]
  %v33 = vld [vmem:[%s0 + $0x24] sm:$0xf]
  %v34 = vld [vmem:[%s0 + $0x28] sm:$0xf]
  %v35 = vld [vmem:[%s0 + $0x2c] sm:$0xf]
  %v36 = vld [vmem:[%s0 + $0x30] sm:$0xf]
  %v37 = vld [vmem:[%s0 + $0x34] sm:$0xf]
  %v38 = vld [vmem:[%s0 + $0x38] sm:$0xf]
  %v39 = vld [vmem:[%s0 + $0x3c] sm:$0xf]
  %v40 = vld [vmem:[%s0 + $0x40] sm:$0xf]
  %v41 = vld [vmem:[%s0 + $0x44] sm:$0xf]
  %v42 = vld [vmem:[%s0 + $0x48] sm:$0xf]
  %v43 = vld [vmem:[%s0 + $0x4c] sm:$0xf]
  %v44 = vld [vmem:[%s0 + $0x50] sm:$0xf]
  %v45 = vld [vmem:[%s0 + $0x54] sm:$0xf]
  %v46 = vld [vmem:[%s0 + $0x58] sm:$0xf]
  %v47 = vld [vmem:[%s0 + $0x5c] sm:$0xf]
  %v48 = vld [vmem:[%s0 + $0x60] sm:$0xf]
  %v49 = vld [vmem:[%s0 + $0x64] sm:$0xf]
  %v50 = vld [vmem:[%s0 + $0x68] sm:$0xf]
  %v51 = vld [vmem:[%s0 + $0x6c] sm:$0xf]
  %v52 = vld [vmem:[%s0 + $0x70] sm:$0xf]
  %v53 = vld [vmem:[%s0 + $0x74] sm:$0xf]
  %v54 = vld [vmem:[%s0 + $0x78] sm:$0xf]
  %v55 = vld [vmem:[%s0 + $0x7c] sm:$0xf]
  %v56 = vld [vmem:[%s0 + $0x80] sm:$0xf]
  %v57 = vld [vmem:[%s0 + $0x84] sm:$0xf]
  %v58 = vld [vmem:[%s0 + $0x88] sm:$0xf]
  %v59 = vld [vmem:[%s0 + $0x8c] sm:$0xf]
  %v60 = vld [vmem:[%s0 + $0x90] sm:$0xf]
  %v61 = vld [vmem:[%s0 + $0x94] sm:$0xf]
  %v62 = vld [vmem:[%s0 + $0x98] sm:$0xf]
  %v63 = vld [vmem:[%s0 + $0x9c] sm:$0xf]
  %v64 = vld [vmem:[%s0 + $0xa0] sm:$0xf]
  %v65 = vld [vmem:[%s0 + $0xa4] sm:$0xf]
  %v66 = vld [vmem:[%s0 + $0xa8] sm:$0xf]
  %v67 = vld [vmem:[%s0 + $0xac] sm:$0xf]
  %v68 = vld [vmem:[%s0 + $0xb0] sm:$0xf]
  %v69 = vld [vmem:[%s0 + $0xb4] sm:$0xf]
  %v70 = vld [vmem:[%s0 + $0xb8] sm:$0xf]
  %v71 = vld [vmem:[%s0 + $0xbc] sm:$0xf]
  %v72 = vld [vmem:[%s0 + $0xc0] sm:$0xf]
  %v73 = vld [vmem:[%s0 + $0xc4] sm:$0xf]
  %v74 = vld [vmem:[%s0 + $0xc8] sm:$0xf]
  %v75 = vld [vmem:[%s0 + $0xcc] sm:$0xf]
  %v76 = vld [vmem:[%s0 + $0xd0] sm:$0xf]
  %v77 = vld [vmem:[%s0 + $0xd4] sm:$0xf]
  %v78 = vld [vmem:[%s0 + $0xd8] sm:$0xf]
  %v79 = vld [vmem:[%s0 + $0xdc] sm:$0xf]
  %v80 = vld [vmem:[%s0 + $0xe0] sm:$0xf]
  %v81 = vld [vmem:[%s0 + $0xe4] sm:$0xf]
  %v82 = vld [vmem:[%s0 + $0xe8] sm:$0xf]
  %v83 = vld [vmem:[%s0 + $0xec] sm:$0xf]
  %v84 = vld [vmem:[%s0 + $0xf0] sm:$0xf]
  %v85 = vld [vmem:[%s0 + $0xf4] sm:$0xf]
  %v86 = vld [vmem:[%s0 + $0xf8] sm:$0xf]
  %v87 = vld [vmem:[%s0 + $0xfc] sm:$0xf]
  %v88 = vld [vmem:[%s1] sm:$0xf]
  %v89 = vld [vmem:[%s1 + $0x4] sm:$0xf]
  %v90 = vld [vmem:[%s1 + $0x8] sm:$0xf]
  %v91 = vld [vmem:[%s1 + $0xc] sm:$0xf]
  %v92 = vld [vmem:[%s1 + $0x10] sm:$0x3]
  %v157 = vunpack.c.l.b16 %v24
  %v158 = vunpack.c.l.b16 %v25
  %v159 = vunpack.c.l.b16 %v26
  %v160 = vunpack.c.l.b16 %v27
  %v161 = vunpack.c.l.b16 %v28
  %v162 = vunpack.c.l.b16 %v29
  %v163 = vunpack.c.l.b16 %v30
  %v164 = vunpack.c.l.b16 %v31
  %v165 = vunpack.c.l.b16 %v32
  %v166 = vunpack.c.l.b16 %v33
  %v167 = vunpack.c.l.b16 %v34
  %v168 = vunpack.c.l.b16 %v35
  %v169 = vunpack.c.l.b16 %v36
  %v170 = vunpack.c.l.b16 %v37
  %v171 = vunpack.c.l.b16 %v38
  %v172 = vunpack.c.l.b16 %v39
  %v173 = vunpack.c.l.b16 %v40
  %v174 = vunpack.c.l.b16 %v41
  %v175 = vunpack.c.l.b16 %v42
  %v176 = vunpack.c.l.b16 %v43
  %v177 = vunpack.c.l.b16 %v44
  %v178 = vunpack.c.l.b16 %v45
  %v179 = vunpack.c.l.b16 %v46
  %v180 = vunpack.c.l.b16 %v47
  %v181 = vunpack.c.l.b16 %v48
  %v182 = vunpack.c.l.b16 %v49
  %v183 = vunpack.c.l.b16 %v50
  %v184 = vunpack.c.l.b16 %v51
  %v185 = vunpack.c.l.b16 %v52
  %v186 = vunpack.c.l.b16 %v53
  %v187 = vunpack.c.l.b16 %v54
  %v188 = vunpack.c.l.b16 %v55
  %v189 = vunpack.c.l.b16 %v56
  %v190 = vunpack.c.l.b16 %v57
  %v191 = vunpack.c.l.b16 %v58
  %v192 = vunpack.c.l.b16 %v59
  %v193 = vunpack.c.l.b16 %v60
  %v194 = vunpack.c.l.b16 %v61
  %v195 = vunpack.c.l.b16 %v62
  %v196 = vunpack.c.l.b16 %v63
  %v197 = vunpack.c.l.b16 %v64
  %v198 = vunpack.c.l.b16 %v65
  %v199 = vunpack.c.l.b16 %v66
  %v200 = vunpack.c.l.b16 %v67
  %v201 = vunpack.c.l.b16 %v68
  %v202 = vunpack.c.l.b16 %v69
  %v203 = vunpack.c.l.b16 %v70
  %v204 = vunpack.c.l.b16 %v71
  %v205 = vunpack.c.l.b16 %v72
  %v206 = vunpack.c.l.b16 %v73
  %v207 = vunpack.c.l.b16 %v74
  %v208 = vunpack.c.l.b16 %v75
  %v209 = vunpack.c.l.b16 %v76
  %v210 = vunpack.c.l.b16 %v77
  %v211 = vunpack.c.l.b16 %v78
  %v212 = vunpack.c.l.b16 %v79
  %v213 = vunpack.c.l.b16 %v80
  %v214 = vunpack.c.l.b16 %v81
  %v215 = vunpack.c.l.b16 %v82
  %v216 = vunpack.c.l.b16 %v83
  %v217 = vunpack.c.l.b16 %v84
  %v218 = vunpack.c.l.b16 %v85
  %v219 = vunpack.c.l.b16 %v86
  %v220 = vunpack.c.l.b16 %v87
  %v221 = vpack.c.b16 %v158, %v157
  %v222 = vpack.c.b16 %v160, %v159
  %v223 = vpack.c.b16 %v162, %v161
  %v224 = vpack.c.b16 %v164, %v163
  %v225 = vpack.c.b16 %v166, %v165
  %v226 = vpack.c.b16 %v168, %v167
  %v227 = vpack.c.b16 %v170, %v169
  %v228 = vpack.c.b16 %v172, %v171
  %v229 = vpack.c.b16 %v174, %v173
  %v230 = vpack.c.b16 %v176, %v175
  %v231 = vpack.c.b16 %v178, %v177
  %v232 = vpack.c.b16 %v180, %v179
  %v233 = vpack.c.b16 %v182, %v181
  %v234 = vpack.c.b16 %v184, %v183
  %v235 = vpack.c.b16 %v186, %v185
  %v236 = vpack.c.b16 %v188, %v187
  %v237 = vpack.c.b16 %v190, %v189
  %v238 = vpack.c.b16 %v192, %v191
  %v239 = vpack.c.b16 %v194, %v193
  %v240 = vpack.c.b16 %v196, %v195
  %v241 = vpack.c.b16 %v198, %v197
  %v242 = vpack.c.b16 %v200, %v199
  %v243 = vpack.c.b16 %v202, %v201
  %v244 = vpack.c.b16 %v204, %v203
  %v245 = vpack.c.b16 %v206, %v205
  %v246 = vpack.c.b16 %v208, %v207
  %v247 = vpack.c.b16 %v210, %v209
  %v248 = vpack.c.b16 %v212, %v211
  %v249 = vpack.c.b16 %v214, %v213
  %v250 = vpack.c.b16 %v216, %v215
  %v251 = vpack.c.b16 %v218, %v217
  %v252 = vpack.c.b16 %v220, %v219
  %v254 = vshrl.u32 %v221, 16
  %v256 = vrot.slane %v254, 7
  %v257 = vshll.u32 %v221, 16
  %v259 = vor.u32 %v256, %v257
  %v261 = vshrl.u32 %v222, 16
  %v263 = vrot.slane %v261, 7
  %v264 = vshll.u32 %v222, 16
  %v266 = vor.u32 %v263, %v264
  %v268 = vshrl.u32 %v223, 16
  %v270 = vrot.slane %v268, 7
  %v271 = vshll.u32 %v223, 16
  %v273 = vor.u32 %v270, %v271
  %v275 = vshrl.u32 %v224, 16
  %v277 = vrot.slane %v275, 7
  %v278 = vshll.u32 %v224, 16
  %v280 = vor.u32 %v277, %v278
  %v282 = vshrl.u32 %v225, 16
  %v284 = vrot.slane %v282, 7
  %v285 = vshll.u32 %v225, 16
  %v287 = vor.u32 %v284, %v285
  %v289 = vshrl.u32 %v226, 16
  %v291 = vrot.slane %v289, 7
  %v292 = vshll.u32 %v226, 16
  %v294 = vor.u32 %v291, %v292
  %v296 = vshrl.u32 %v227, 16
  %v298 = vrot.slane %v296, 7
  %v299 = vshll.u32 %v227, 16
  %v301 = vor.u32 %v298, %v299
  %v303 = vshrl.u32 %v228, 16
  %v305 = vrot.slane %v303, 7
  %v306 = vshll.u32 %v228, 16
  %v308 = vor.u32 %v305, %v306
  %v310 = vshrl.u32 %v229, 16
  %v312 = vrot.slane %v310, 7
  %v313 = vshll.u32 %v229, 16
  %v315 = vor.u32 %v312, %v313
  %v317 = vshrl.u32 %v230, 16
  %v319 = vrot.slane %v317, 7
  %v320 = vshll.u32 %v230, 16
  %v322 = vor.u32 %v319, %v320
  %v324 = vshrl.u32 %v231, 16
  %v326 = vrot.slane %v324, 7
  %v327 = vshll.u32 %v231, 16
  %v329 = vor.u32 %v326, %v327
  %v331 = vshrl.u32 %v232, 16
  %v333 = vrot.slane %v331, 7
  %v334 = vshll.u32 %v232, 16
  %v336 = vor.u32 %v333, %v334
  %v338 = vshrl.u32 %v233, 16
  %v340 = vrot.slane %v338, 7
  %v341 = vshll.u32 %v233, 16
  %v343 = vor.u32 %v340, %v341
  %v345 = vshrl.u32 %v234, 16
  %v347 = vrot.slane %v345, 7
  %v348 = vshll.u32 %v234, 16
  %v350 = vor.u32 %v347, %v348
  %v352 = vshrl.u32 %v235, 16
  %v354 = vrot.slane %v352, 7
  %v355 = vshll.u32 %v235, 16
  %v357 = vor.u32 %v354, %v355
  %v359 = vshrl.u32 %v236, 16
  %v361 = vrot.slane %v359, 7
  %v362 = vshll.u32 %v236, 16
  %v364 = vor.u32 %v361, %v362
  %v366 = vshrl.u32 %v237, 16
  %v368 = vrot.slane %v366, 7
  %v369 = vshll.u32 %v237, 16
  %v371 = vor.u32 %v368, %v369
  %v373 = vshrl.u32 %v238, 16
  %v375 = vrot.slane %v373, 7
  %v376 = vshll.u32 %v238, 16
  %v378 = vor.u32 %v375, %v376
  %v380 = vshrl.u32 %v239, 16
  %v382 = vrot.slane %v380, 7
  %v383 = vshll.u32 %v239, 16
  %v385 = vor.u32 %v382, %v383
  %v387 = vshrl.u32 %v240, 16
  %v389 = vrot.slane %v387, 7
  %v390 = vshll.u32 %v240, 16
  %v392 = vor.u32 %v389, %v390
  %v394 = vshrl.u32 %v241, 16
  %v396 = vrot.slane %v394, 7
  %v397 = vshll.u32 %v241, 16
  %v399 = vor.u32 %v396, %v397
  %v401 = vshrl.u32 %v242, 16
  %v403 = vrot.slane %v401, 7
  %v404 = vshll.u32 %v242, 16
  %v406 = vor.u32 %v403, %v404
  %v408 = vshrl.u32 %v243, 16
  %v410 = vrot.slane %v408, 7
  %v411 = vshll.u32 %v243, 16
  %v413 = vor.u32 %v410, %v411
  %v415 = vshrl.u32 %v244, 16
  %v417 = vrot.slane %v415, 7
  %v418 = vshll.u32 %v244, 16
  %v420 = vor.u32 %v417, %v418
  %v422 = vshrl.u32 %v245, 16
  %v424 = vrot.slane %v422, 7
  %v425 = vshll.u32 %v245, 16
  %v427 = vor.u32 %v424, %v425
  %v429 = vshrl.u32 %v246, 16
  %v431 = vrot.slane %v429, 7
  %v432 = vshll.u32 %v246, 16
  %v434 = vor.u32 %v431, %v432
  %v436 = vshrl.u32 %v247, 16
  %v438 = vrot.slane %v436, 7
  %v439 = vshll.u32 %v247, 16
  %v441 = vor.u32 %v438, %v439
  %v443 = vshrl.u32 %v248, 16
  %v445 = vrot.slane %v443, 7
  %v446 = vshll.u32 %v248, 16
  %v448 = vor.u32 %v445, %v446
  %v450 = vshrl.u32 %v249, 16
  %v452 = vrot.slane %v450, 7
  %v453 = vshll.u32 %v249, 16
  %v455 = vor.u32 %v452, %v453
  %v457 = vshrl.u32 %v250, 16
  %v459 = vrot.slane %v457, 7
  %v460 = vshll.u32 %v250, 16
  %v462 = vor.u32 %v459, %v460
  %v464 = vshrl.u32 %v251, 16
  %v466 = vrot.slane %v464, 7
  %v467 = vshll.u32 %v251, 16
  %v469 = vor.u32 %v466, %v467
  %v471 = vshrl.u32 %v252, 16
  %v473 = vrot.slane %v471, 7
  %v474 = vshll.u32 %v252, 16
  %v476 = vor.u32 %v473, %v474
  %vm541 = vcmask 1040384
  %vm542 = vsmask.f32 256
  %vm543 = vmand %vm541, %vm542
  %v544 = vsel %vm543, 0, %v259
  %v545 = vsel %vm543, 0, %v266
  %v546 = vsel %vm543, 0, %v273
  %v547 = vsel %vm543, 0, %v280
  %v548 = vsel %vm543, 0, %v287
  %v549 = vsel %vm543, 0, %v294
  %v550 = vsel %vm543, 0, %v301
  %v551 = vsel %vm543, 0, %v308
  %v552 = vsel %vm543, 0, %v315
  %v553 = vsel %vm543, 0, %v322
  %v554 = vsel %vm543, 0, %v329
  %v555 = vsel %vm543, 0, %v336
  %v556 = vsel %vm543, 0, %v343
  %v557 = vsel %vm543, 0, %v350
  %v558 = vsel %vm543, 0, %v357
  %v559 = vsel %vm543, 0, %v364
  %v560 = vsel %vm543, 0, %v371
  %v561 = vsel %vm543, 0, %v378
  %v562 = vsel %vm543, 0, %v385
  %v563 = vsel %vm543, 0, %v392
  %v564 = vsel %vm543, 0, %v399
  %v565 = vsel %vm543, 0, %v406
  %v566 = vsel %vm543, 0, %v413
  %v567 = vsel %vm543, 0, %v420
  %v568 = vsel %vm543, 0, %v427
  %v569 = vsel %vm543, 0, %v434
  %v570 = vsel %vm543, 0, %v441
  %v571 = vsel %vm543, 0, %v448
  %v572 = vsel %vm543, 0, %v455
  %v573 = vsel %vm543, 0, %v462
  %v574 = vsel %vm543, 0, %v469
  %v575 = vsel %vm543, 0, %v476
  %v576 = vsel %vm543, %v256, 0
  %v577 = vsel %vm543, %v263, 0
  %v578 = vsel %vm543, %v270, 0
  %v579 = vsel %vm543, %v277, 0
  %v580 = vsel %vm543, %v284, 0
  %v581 = vsel %vm543, %v291, 0
  %v582 = vsel %vm543, %v298, 0
  %v583 = vsel %vm543, %v305, 0
  %v584 = vsel %vm543, %v312, 0
  %v585 = vsel %vm543, %v319, 0
  %v586 = vsel %vm543, %v326, 0
  %v587 = vsel %vm543, %v333, 0
  %v588 = vsel %vm543, %v340, 0
  %v589 = vsel %vm543, %v347, 0
  %v590 = vsel %vm543, %v354, 0
  %v591 = vsel %vm543, %v361, 0
  %v592 = vsel %vm543, %v368, 0
  %v593 = vsel %vm543, %v375, 0
  %v594 = vsel %vm543, %v382, 0
  %v595 = vsel %vm543, %v389, 0
  %v596 = vsel %vm543, %v396, 0
  %v597 = vsel %vm543, %v403, 0
  %v598 = vsel %vm543, %v410, 0
  %v599 = vsel %vm543, %v417, 0
  %v600 = vsel %vm543, %v424, 0
  %v601 = vsel %vm543, %v431, 0
  %v602 = vsel %vm543, %v438, 0
  %v603 = vsel %vm543, %v445, 0
  %v604 = vsel %vm543, %v452, 0
  %v605 = vsel %vm543, %v459, 0
  %v606 = vsel %vm543, %v466, 0
  %v607 = vsel %vm543, %v473, 0
  %640 = vrot.lane.b32.xlu0 %v544, 4
  %v641 = vpop.permute.xlu0 %640
  %642 = vrot.lane.b32.xlu0 %v576, 4
  %v643 = vpop.permute.xlu0 %642
  %644 = vrot.lane.b32.xlu0 %v546, 4
  %v645 = vpop.permute.xlu0 %644
  %646 = vrot.lane.b32.xlu0 %v578, 4
  %v647 = vpop.permute.xlu0 %646
  %648 = vrot.lane.b32.xlu0 %v548, 4
  %v649 = vpop.permute.xlu0 %648
  %650 = vrot.lane.b32.xlu0 %v580, 4
  %v651 = vpop.permute.xlu0 %650
  %652 = vrot.lane.b32.xlu0 %v550, 4
  %v653 = vpop.permute.xlu0 %652
  %654 = vrot.lane.b32.xlu0 %v582, 4
  %v655 = vpop.permute.xlu0 %654
  %656 = vrot.lane.b32.xlu0 %v552, 4
  %v657 = vpop.permute.xlu0 %656
  %658 = vrot.lane.b32.xlu0 %v584, 4
  %v659 = vpop.permute.xlu0 %658
  %660 = vrot.lane.b32.xlu0 %v554, 4
  %v661 = vpop.permute.xlu0 %660
  %662 = vrot.lane.b32.xlu0 %v586, 4
  %v663 = vpop.permute.xlu0 %662
  %664 = vrot.lane.b32.xlu0 %v556, 4
  %v665 = vpop.permute.xlu0 %664
  %666 = vrot.lane.b32.xlu0 %v588, 4
  %v667 = vpop.permute.xlu0 %666
  %668 = vrot.lane.b32.xlu0 %v558, 4
  %v669 = vpop.permute.xlu0 %668
  %670 = vrot.lane.b32.xlu0 %v590, 4
  %v671 = vpop.permute.xlu0 %670
  %672 = vrot.lane.b32.xlu0 %v560, 4
  %v673 = vpop.permute.xlu0 %672
  %674 = vrot.lane.b32.xlu0 %v592, 4
  %v675 = vpop.permute.xlu0 %674
  %676 = vrot.lane.b32.xlu0 %v562, 4
  %v677 = vpop.permute.xlu0 %676
  %678 = vrot.lane.b32.xlu0 %v594, 4
  %v679 = vpop.permute.xlu0 %678
  %680 = vrot.lane.b32.xlu0 %v564, 4
  %v681 = vpop.permute.xlu0 %680
  %682 = vrot.lane.b32.xlu0 %v596, 4
  %v683 = vpop.permute.xlu0 %682
  %684 = vrot.lane.b32.xlu0 %v566, 4
  %v685 = vpop.permute.xlu0 %684
  %686 = vrot.lane.b32.xlu0 %v598, 4
  %v687 = vpop.permute.xlu0 %686
  %688 = vrot.lane.b32.xlu0 %v568, 4
  %v689 = vpop.permute.xlu0 %688
  %690 = vrot.lane.b32.xlu0 %v600, 4
  %v691 = vpop.permute.xlu0 %690
  %692 = vrot.lane.b32.xlu0 %v570, 4
  %v693 = vpop.permute.xlu0 %692
  %694 = vrot.lane.b32.xlu0 %v602, 4
  %v695 = vpop.permute.xlu0 %694
  %696 = vrot.lane.b32.xlu0 %v572, 4
  %v697 = vpop.permute.xlu0 %696
  %698 = vrot.lane.b32.xlu0 %v604, 4
  %v699 = vpop.permute.xlu0 %698
  %700 = vrot.lane.b32.xlu0 %v574, 4
  %v701 = vpop.permute.xlu0 %700
  %702 = vrot.lane.b32.xlu0 %v606, 4
  %v703 = vpop.permute.xlu0 %702
  %736 = vrot.lane.b32.xlu0 %v545, 8
  %v737 = vpop.permute.xlu0 %736
  %738 = vrot.lane.b32.xlu0 %v577, 8
  %v739 = vpop.permute.xlu0 %738
  %740 = vrot.lane.b32.xlu0 %v547, 8
  %v741 = vpop.permute.xlu0 %740
  %742 = vrot.lane.b32.xlu0 %v579, 8
  %v743 = vpop.permute.xlu0 %742
  %744 = vrot.lane.b32.xlu0 %v549, 8
  %v745 = vpop.permute.xlu0 %744
  %746 = vrot.lane.b32.xlu0 %v581, 8
  %v747 = vpop.permute.xlu0 %746
  %748 = vrot.lane.b32.xlu0 %v551, 8
  %v749 = vpop.permute.xlu0 %748
  %750 = vrot.lane.b32.xlu0 %v583, 8
  %v751 = vpop.permute.xlu0 %750
  %752 = vrot.lane.b32.xlu0 %v553, 8
  %v753 = vpop.permute.xlu0 %752
  %754 = vrot.lane.b32.xlu0 %v585, 8
  %v755 = vpop.permute.xlu0 %754
  %756 = vrot.lane.b32.xlu0 %v555, 8
  %v757 = vpop.permute.xlu0 %756
  %758 = vrot.lane.b32.xlu0 %v587, 8
  %v759 = vpop.permute.xlu0 %758
  %760 = vrot.lane.b32.xlu0 %v557, 8
  %v761 = vpop.permute.xlu0 %760
  %762 = vrot.lane.b32.xlu0 %v589, 8
  %v763 = vpop.permute.xlu0 %762
  %764 = vrot.lane.b32.xlu0 %v559, 8
  %v765 = vpop.permute.xlu0 %764
  %766 = vrot.lane.b32.xlu0 %v591, 8
  %v767 = vpop.permute.xlu0 %766
  %768 = vrot.lane.b32.xlu0 %v561, 8
  %v769 = vpop.permute.xlu0 %768
  %770 = vrot.lane.b32.xlu0 %v593, 8
  %v771 = vpop.permute.xlu0 %770
  %772 = vrot.lane.b32.xlu0 %v563, 8
  %v773 = vpop.permute.xlu0 %772
  %774 = vrot.lane.b32.xlu0 %v595, 8
  %v775 = vpop.permute.xlu0 %774
  %776 = vrot.lane.b32.xlu0 %v565, 8
  %v777 = vpop.permute.xlu0 %776
  %778 = vrot.lane.b32.xlu0 %v597, 8
  %v779 = vpop.permute.xlu0 %778
  %780 = vrot.lane.b32.xlu0 %v567, 8
  %v781 = vpop.permute.xlu0 %780
  %782 = vrot.lane.b32.xlu0 %v599, 8
  %v783 = vpop.permute.xlu0 %782
  %784 = vrot.lane.b32.xlu0 %v569, 8
  %v785 = vpop.permute.xlu0 %784
  %786 = vrot.lane.b32.xlu0 %v601, 8
  %v787 = vpop.permute.xlu0 %786
  %788 = vrot.lane.b32.xlu0 %v571, 8
  %v789 = vpop.permute.xlu0 %788
  %790 = vrot.lane.b32.xlu0 %v603, 8
  %v791 = vpop.permute.xlu0 %790
  %792 = vrot.lane.b32.xlu0 %v573, 8
  %v793 = vpop.permute.xlu0 %792
  %794 = vrot.lane.b32.xlu0 %v605, 8
  %v795 = vpop.permute.xlu0 %794
  %796 = vrot.lane.b32.xlu0 %v575, 8
  %v797 = vpop.permute.xlu0 %796
  %798 = vrot.lane.b32.xlu0 %v607, 8
  %v799 = vpop.permute.xlu0 %798
  %vm800 = vcmask 31744
  %v803 = vsel %vm800, 0, %v641
  %v805 = vsel %vm800, 0, %v643
  %v808 = vsel %vm800, %v545, %v645
  %v811 = vsel %vm800, %v577, %v647
  %v814 = vsel %vm800, %v547, %v649
  %v817 = vsel %vm800, %v579, %v651
  %v820 = vsel %vm800, %v549, %v653
  %v823 = vsel %vm800, %v581, %v655
  %v826 = vsel %vm800, %v551, %v657
  %v829 = vsel %vm800, %v583, %v659
  %v832 = vsel %vm800, %v553, %v661
  %v835 = vsel %vm800, %v585, %v663
  %v838 = vsel %vm800, %v555, %v665
  %v841 = vsel %vm800, %v587, %v667
  %v844 = vsel %vm800, %v557, %v669
  %v847 = vsel %vm800, %v589, %v671
  %v849 = vsel %vm800, 0, %v673
  %v851 = vsel %vm800, 0, %v675
  %v854 = vsel %vm800, %v561, %v677
  %v857 = vsel %vm800, %v593, %v679
  %v860 = vsel %vm800, %v563, %v681
  %v863 = vsel %vm800, %v595, %v683
  %v866 = vsel %vm800, %v565, %v685
  %v869 = vsel %vm800, %v597, %v687
  %v872 = vsel %vm800, %v567, %v689
  %v875 = vsel %vm800, %v599, %v691
  %v878 = vsel %vm800, %v569, %v693
  %v881 = vsel %vm800, %v601, %v695
  %v884 = vsel %vm800, %v571, %v697
  %v887 = vsel %vm800, %v603, %v699
  %v890 = vsel %vm800, %v573, %v701
  %v893 = vsel %vm800, %v605, %v703
  %vm894 = vcmask 64512
  %v896 = vsel %vm894, %v803, %v737
  %v898 = vsel %vm894, %v805, %v739
  %v900 = vsel %vm894, %v808, %v741
  %v902 = vsel %vm894, %v811, %v743
  %v904 = vsel %vm894, %v814, %v745
  %v906 = vsel %vm894, %v817, %v747
  %v908 = vsel %vm894, %v820, %v749
  %v910 = vsel %vm894, %v823, %v751
  %v912 = vsel %vm894, %v826, %v753
  %v914 = vsel %vm894, %v829, %v755
  %v916 = vsel %vm894, %v832, %v757
  %v918 = vsel %vm894, %v835, %v759
  %v920 = vsel %vm894, %v838, %v761
  %v922 = vsel %vm894, %v841, %v763
  %v924 = vsel %vm894, %v844, %v765
  %v926 = vsel %vm894, %v847, %v767
  %v928 = vsel %vm894, %v849, %v769
  %v930 = vsel %vm894, %v851, %v771
  %v932 = vsel %vm894, %v854, %v773
  %v934 = vsel %vm894, %v857, %v775
  %v936 = vsel %vm894, %v860, %v777
  %v938 = vsel %vm894, %v863, %v779
  %v940 = vsel %vm894, %v866, %v781
  %v942 = vsel %vm894, %v869, %v783
  %v944 = vsel %vm894, %v872, %v785
  %v946 = vsel %vm894, %v875, %v787
  %v948 = vsel %vm894, %v878, %v789
  %v950 = vsel %vm894, %v881, %v791
  %v952 = vsel %vm894, %v884, %v793
  %v954 = vsel %vm894, %v887, %v795
  %v956 = vsel %vm894, %v890, %v797
  %v958 = vsel %vm894, %v893, %v799
  %vm959 = vsmask.f32 7424
  %v960 = vshrl.u32 %v896, 16
  %v962 = vshll.u32 %v896, 16
  %v964 = vrot.slane %v962, 1
  %v965 = vor.u32 %v960, %v964
  %v966 = vshll.u32 %v898, 16
  %v968 = vrot.slane %v966, 1
  %v969 = vsel %vm959, %v965, %v968
  %v970 = vshrl.u32 %v900, 16
  %v972 = vshll.u32 %v900, 16
  %v974 = vrot.slane %v972, 1
  %v975 = vor.u32 %v970, %v974
  %v976 = vshll.u32 %v902, 16
  %v978 = vrot.slane %v976, 1
  %v979 = vsel %vm959, %v975, %v978
  %v980 = vshrl.u32 %v904, 16
  %v982 = vshll.u32 %v904, 16
  %v984 = vrot.slane %v982, 1
  %v985 = vor.u32 %v980, %v984
  %v986 = vshll.u32 %v906, 16
  %v988 = vrot.slane %v986, 1
  %v989 = vsel %vm959, %v985, %v988
  %v990 = vshrl.u32 %v908, 16
  %v992 = vshll.u32 %v908, 16
  %v994 = vrot.slane %v992, 1
  %v995 = vor.u32 %v990, %v994
  %v996 = vshll.u32 %v910, 16
  %v998 = vrot.slane %v996, 1
  %v999 = vsel %vm959, %v995, %v998
  %v1000 = vshrl.u32 %v912, 16
  %v1002 = vshll.u32 %v912, 16
  %v1004 = vrot.slane %v1002, 1
  %v1005 = vor.u32 %v1000, %v1004
  %v1006 = vshll.u32 %v914, 16
  %v1008 = vrot.slane %v1006, 1
  %v1009 = vsel %vm959, %v1005, %v1008
  %v1010 = vshrl.u32 %v916, 16
  %v1012 = vshll.u32 %v916, 16
  %v1014 = vrot.slane %v1012, 1
  %v1015 = vor.u32 %v1010, %v1014
  %v1016 = vshll.u32 %v918, 16
  %v1018 = vrot.slane %v1016, 1
  %v1019 = vsel %vm959, %v1015, %v1018
  %v1020 = vshrl.u32 %v920, 16
  %v1022 = vshll.u32 %v920, 16
  %v1024 = vrot.slane %v1022, 1
  %v1025 = vor.u32 %v1020, %v1024
  %v1026 = vshll.u32 %v922, 16
  %v1028 = vrot.slane %v1026, 1
  %v1029 = vsel %vm959, %v1025, %v1028
  %v1030 = vshrl.u32 %v924, 16
  %v1032 = vshll.u32 %v924, 16
  %v1034 = vrot.slane %v1032, 1
  %v1035 = vor.u32 %v1030, %v1034
  %v1036 = vshll.u32 %v926, 16
  %v1038 = vrot.slane %v1036, 1
  %v1039 = vsel %vm959, %v1035, %v1038
  %v1040 = vshrl.u32 %v928, 16
  %v1042 = vshll.u32 %v928, 16
  %v1044 = vrot.slane %v1042, 1
  %v1045 = vor.u32 %v1040, %v1044
  %v1046 = vshll.u32 %v930, 16
  %v1048 = vrot.slane %v1046, 1
  %v1049 = vsel %vm959, %v1045, %v1048
  %v1050 = vshrl.u32 %v932, 16
  %v1052 = vshll.u32 %v932, 16
  %v1054 = vrot.slane %v1052, 1
  %v1055 = vor.u32 %v1050, %v1054
  %v1056 = vshll.u32 %v934, 16
  %v1058 = vrot.slane %v1056, 1
  %v1059 = vsel %vm959, %v1055, %v1058
  %v1060 = vshrl.u32 %v936, 16
  %v1062 = vshll.u32 %v936, 16
  %v1064 = vrot.slane %v1062, 1
  %v1065 = vor.u32 %v1060, %v1064
  %v1066 = vshll.u32 %v938, 16
  %v1068 = vrot.slane %v1066, 1
  %v1069 = vsel %vm959, %v1065, %v1068
  %v1070 = vshrl.u32 %v940, 16
  %v1072 = vshll.u32 %v940, 16
  %v1074 = vrot.slane %v1072, 1
  %v1075 = vor.u32 %v1070, %v1074
  %v1076 = vshll.u32 %v942, 16
  %v1078 = vrot.slane %v1076, 1
  %v1079 = vsel %vm959, %v1075, %v1078
  %v1080 = vshrl.u32 %v944, 16
  %v1082 = vshll.u32 %v944, 16
  %v1084 = vrot.slane %v1082, 1
  %v1085 = vor.u32 %v1080, %v1084
  %v1086 = vshll.u32 %v946, 16
  %v1088 = vrot.slane %v1086, 1
  %v1089 = vsel %vm959, %v1085, %v1088
  %v1090 = vshrl.u32 %v948, 16
  %v1092 = vshll.u32 %v948, 16
  %v1094 = vrot.slane %v1092, 1
  %v1095 = vor.u32 %v1090, %v1094
  %v1096 = vshll.u32 %v950, 16
  %v1098 = vrot.slane %v1096, 1
  %v1099 = vsel %vm959, %v1095, %v1098
  %v1100 = vshrl.u32 %v952, 16
  %v1102 = vshll.u32 %v952, 16
  %v1104 = vrot.slane %v1102, 1
  %v1105 = vor.u32 %v1100, %v1104
  %v1106 = vshll.u32 %v954, 16
  %v1108 = vrot.slane %v1106, 1
  %v1109 = vsel %vm959, %v1105, %v1108
  %v1110 = vshrl.u32 %v956, 16
  %v1112 = vshll.u32 %v956, 16
  %v1114 = vrot.slane %v1112, 1
  %v1115 = vor.u32 %v1110, %v1114
  %v1116 = vshll.u32 %v958, 16
  %v1118 = vrot.slane %v1116, 1
  %v1119 = vsel %vm959, %v1115, %v1118
  %1120 = vrot.lane.b32.xlu0 %v969, 12
  %v1121 = vpop.permute.xlu0 %1120
  %1122 = vrot.lane.b32.xlu0 %v979, 12
  %v1123 = vpop.permute.xlu0 %1122
  %1124 = vrot.lane.b32.xlu0 %v989, 12
  %v1125 = vpop.permute.xlu0 %1124
  %1126 = vrot.lane.b32.xlu0 %v999, 12
  %v1127 = vpop.permute.xlu0 %1126
  %1128 = vrot.lane.b32.xlu0 %v1009, 12
  %v1129 = vpop.permute.xlu0 %1128
  %1130 = vrot.lane.b32.xlu0 %v1019, 12
  %v1131 = vpop.permute.xlu0 %1130
  %1132 = vrot.lane.b32.xlu0 %v1029, 12
  %v1133 = vpop.permute.xlu0 %1132
  %1134 = vrot.lane.b32.xlu0 %v1039, 12
  %v1135 = vpop.permute.xlu0 %1134
  %1136 = vrot.lane.b32.xlu0 %v1049, 12
  %v1137 = vpop.permute.xlu0 %1136
  %1138 = vrot.lane.b32.xlu0 %v1059, 12
  %v1139 = vpop.permute.xlu0 %1138
  %1140 = vrot.lane.b32.xlu0 %v1069, 12
  %v1141 = vpop.permute.xlu0 %1140
  %1142 = vrot.lane.b32.xlu0 %v1079, 12
  %v1143 = vpop.permute.xlu0 %1142
  %1144 = vrot.lane.b32.xlu0 %v1089, 12
  %v1145 = vpop.permute.xlu0 %1144
  %1146 = vrot.lane.b32.xlu0 %v1099, 12
  %v1147 = vpop.permute.xlu0 %1146
  %1148 = vrot.lane.b32.xlu0 %v1109, 12
  %v1149 = vpop.permute.xlu0 %1148
  %1150 = vrot.lane.b32.xlu0 %v1119, 12
  %v1151 = vpop.permute.xlu0 %1150
  %vm1184 = vcmask 1046528
  %v1185 = vrot.slane %v896, 1
  %v1186 = vrot.slane %v898, 1
  %v1187 = vsel %vm1184, %v1185, %v1186
  %v1188 = vrot.slane %v900, 1
  %v1189 = vrot.slane %v902, 1
  %v1190 = vsel %vm1184, %v1188, %v1189
  %v1191 = vrot.slane %v904, 1
  %v1192 = vrot.slane %v906, 1
  %v1193 = vsel %vm1184, %v1191, %v1192
  %v1194 = vrot.slane %v908, 1
  %v1195 = vrot.slane %v910, 1
  %v1196 = vsel %vm1184, %v1194, %v1195
  %v1197 = vrot.slane %v912, 1
  %v1198 = vrot.slane %v914, 1
  %v1199 = vsel %vm1184, %v1197, %v1198
  %v1200 = vrot.slane %v916, 1
  %v1201 = vrot.slane %v918, 1
  %v1202 = vsel %vm1184, %v1200, %v1201
  %v1203 = vrot.slane %v920, 1
  %v1204 = vrot.slane %v922, 1
  %v1205 = vsel %vm1184, %v1203, %v1204
  %v1206 = vrot.slane %v924, 1
  %v1207 = vrot.slane %v926, 1
  %v1208 = vsel %vm1184, %v1206, %v1207
  %v1209 = vrot.slane %v928, 1
  %v1210 = vrot.slane %v930, 1
  %v1211 = vsel %vm1184, %v1209, %v1210
  %v1212 = vrot.slane %v932, 1
  %v1213 = vrot.slane %v934, 1
  %v1214 = vsel %vm1184, %v1212, %v1213
  %v1215 = vrot.slane %v936, 1
  %v1216 = vrot.slane %v938, 1
  %v1217 = vsel %vm1184, %v1215, %v1216
  %v1218 = vrot.slane %v940, 1
  %v1219 = vrot.slane %v942, 1
  %v1220 = vsel %vm1184, %v1218, %v1219
  %v1221 = vrot.slane %v944, 1
  %v1222 = vrot.slane %v946, 1
  %v1223 = vsel %vm1184, %v1221, %v1222
  %v1224 = vrot.slane %v948, 1
  %v1225 = vrot.slane %v950, 1
  %v1226 = vsel %vm1184, %v1224, %v1225
  %v1227 = vrot.slane %v952, 1
  %v1228 = vrot.slane %v954, 1
  %v1229 = vsel %vm1184, %v1227, %v1228
  %v1230 = vrot.slane %v956, 1
  %v1231 = vrot.slane %v958, 1
  %v1232 = vsel %vm1184, %v1230, %v1231
  %1233 = vrot.lane.b32.xlu0 %v1187, 24
  %v1234 = vpop.permute.xlu0 %1233
  %1235 = vrot.lane.b32.xlu0 %v1190, 24
  %v1236 = vpop.permute.xlu0 %1235
  %1237 = vrot.lane.b32.xlu0 %v1193, 24
  %v1238 = vpop.permute.xlu0 %1237
  %1239 = vrot.lane.b32.xlu0 %v1196, 24
  %v1240 = vpop.permute.xlu0 %1239
  %1241 = vrot.lane.b32.xlu0 %v1199, 24
  %v1242 = vpop.permute.xlu0 %1241
  %1243 = vrot.lane.b32.xlu0 %v1202, 24
  %v1244 = vpop.permute.xlu0 %1243
  %1245 = vrot.lane.b32.xlu0 %v1205, 24
  %v1246 = vpop.permute.xlu0 %1245
  %1247 = vrot.lane.b32.xlu0 %v1208, 24
  %v1248 = vpop.permute.xlu0 %1247
  %1249 = vrot.lane.b32.xlu0 %v1211, 24
  %v1250 = vpop.permute.xlu0 %1249
  %1251 = vrot.lane.b32.xlu0 %v1214, 24
  %v1252 = vpop.permute.xlu0 %1251
  %1253 = vrot.lane.b32.xlu0 %v1217, 24
  %v1254 = vpop.permute.xlu0 %1253
  %1255 = vrot.lane.b32.xlu0 %v1220, 24
  %v1256 = vpop.permute.xlu0 %1255
  %1257 = vrot.lane.b32.xlu0 %v1223, 24
  %v1258 = vpop.permute.xlu0 %1257
  %1259 = vrot.lane.b32.xlu0 %v1226, 24
  %v1260 = vpop.permute.xlu0 %1259
  %1261 = vrot.lane.b32.xlu0 %v1229, 24
  %v1262 = vpop.permute.xlu0 %1261
  %1263 = vrot.lane.b32.xlu0 %v1232, 24
  %v1264 = vpop.permute.xlu0 %1263
  %vm1265 = vcmask 97280
  %v1267 = vsel %vm1265, %v896, %v1121
  %v1269 = vsel %vm1265, %v900, %v1123
  %v1271 = vsel %vm1265, %v904, %v1125
  %v1273 = vsel %vm1265, %v908, %v1127
  %v1275 = vsel %vm1265, %v912, %v1129
  %v1277 = vsel %vm1265, %v916, %v1131
  %v1279 = vsel %vm1265, %v920, %v1133
  %v1281 = vsel %vm1265, %v924, %v1135
  %v1283 = vsel %vm1265, %v928, %v1137
  %v1285 = vsel %vm1265, %v932, %v1139
  %v1287 = vsel %vm1265, %v936, %v1141
  %v1289 = vsel %vm1265, %v940, %v1143
  %v1291 = vsel %vm1265, %v944, %v1145
  %v1293 = vsel %vm1265, %v948, %v1147
  %v1295 = vsel %vm1265, %v952, %v1149
  %v1297 = vsel %vm1265, %v956, %v1151
  %vm1298 = vcmask 195584
  %v1300 = vsel %vm1298, %v1267, %v1234
  %v1302 = vsel %vm1298, %v1269, %v1236
  %v1304 = vsel %vm1298, %v1271, %v1238
  %v1306 = vsel %vm1298, %v1273, %v1240
  %v1308 = vsel %vm1298, %v1275, %v1242
  %v1310 = vsel %vm1298, %v1277, %v1244
  %v1312 = vsel %vm1298, %v1279, %v1246
  %v1314 = vsel %vm1298, %v1281, %v1248
  %v1316 = vsel %vm1298, %v1283, %v1250
  %v1318 = vsel %vm1298, %v1285, %v1252
  %v1320 = vsel %vm1298, %v1287, %v1254
  %v1322 = vsel %vm1298, %v1289, %v1256
  %v1324 = vsel %vm1298, %v1291, %v1258
  %v1326 = vsel %vm1298, %v1293, %v1260
  %v1328 = vsel %vm1298, %v1295, %v1262
  %v1330 = vsel %vm1298, %v1297, %v1264
  %v1336 = vunpack.c.l.b16 %v88
  %v1337 = vunpack.c.l.b16 %v89
  %v1338 = vunpack.c.l.b16 %v90
  %v1339 = vunpack.c.l.b16 %v91
  %v1340 = vunpack.c.l.b16 %v92
  %v1341 = vpack.c.b16 %v1337, %v1336
  %v1342 = vpack.c.b16 %v1339, %v1338
  %v1343 = vpack.c.b16 %v1340, %v1340
  %vm1346 = vcmask 293888
  %v1347 = vsel %vm1346, %v1300, 0
  %v1349 = vsel %vm1346, %v1302, 0
  %v1351 = vsel %vm1346, %v1304, 0
  %v1353 = vsel %vm1346, %v1306, 0
  %v1355 = vsel %vm1346, %v1308, 0
  %v1357 = vsel %vm1346, %v1310, 0
  %v1359 = vsel %vm1346, %v1312, 0
  %v1361 = vsel %vm1346, %v1314, 0
  %v1363 = vsel %vm1346, %v1316, 0
  %v1365 = vsel %vm1346, %v1318, 0
  %v1367 = vsel %vm1346, %v1320, 0
  %v1369 = vsel %vm1346, %v1322, 0
  %v1371 = vsel %vm1346, %v1324, 0
  %v1373 = vsel %vm1346, %v1326, 0
  %v1375 = vsel %vm1346, %v1328, 0
  %v1377 = vsel %vm1346, %v1330, 0
  %vm1379 = vcmask 1041408
  %v1381 = vsel %vm1379, %v1343, 0
  %1383 = vmatpush.bf16.msra.mxu0 0
  %1384 = vmatpush.bf16.msra.mxu0 0
  %1385 = vmatpush.bf16.msra.mxu0 0
  %1386 = vmatpush.bf16.msra.mxu0 0
  %1387 = vmatpush.bf16.msra.mxu0 0
  %1388 = vmatpush.bf16.msra.mxu0 %v1381
  %1389 = vmatpush.bf16.msra.mxu0 %v1342
  %1390 = vmatpush.bf16.msra.mxu0 %v1341
  %1391 = vmatmul.bf16.gmra.mxu0 %v1347
  %v1392 = vpop.f32.mrf.mxu0
  %v1393 = vadd.f32 0.0, %v1392
  %v1394 = vpop.f32.mrf.mxu0
  %v1395 = vadd.f32 0.0, %v1394
  %1396 = vmatmul.bf16.gmra.mxu0 %v1349
  %v1397 = vpop.f32.mrf.mxu0
  %v1398 = vadd.f32 0.0, %v1397
  %v1399 = vpop.f32.mrf.mxu0
  %v1400 = vadd.f32 0.0, %v1399
  %1401 = vmatmul.bf16.gmra.mxu0 %v1351
  %v1402 = vpop.f32.mrf.mxu0
  %v1403 = vadd.f32 0.0, %v1402
  %v1404 = vpop.f32.mrf.mxu0
  %v1405 = vadd.f32 0.0, %v1404
  %1406 = vmatmul.bf16.gmra.mxu0 %v1353
  %v1407 = vpop.f32.mrf.mxu0
  %v1408 = vadd.f32 0.0, %v1407
  %v1409 = vpop.f32.mrf.mxu0
  %v1410 = vadd.f32 0.0, %v1409
  %1411 = vmatmul.bf16.gmra.mxu0 %v1355
  %v1412 = vpop.f32.mrf.mxu0
  %v1413 = vadd.f32 0.0, %v1412
  %v1414 = vpop.f32.mrf.mxu0
  %v1415 = vadd.f32 0.0, %v1414
  %1416 = vmatmul.bf16.gmra.mxu0 %v1357
  %v1417 = vpop.f32.mrf.mxu0
  %v1418 = vadd.f32 0.0, %v1417
  %v1419 = vpop.f32.mrf.mxu0
  %v1420 = vadd.f32 0.0, %v1419
  %1421 = vmatmul.bf16.gmra.mxu0 %v1359
  %v1422 = vpop.f32.mrf.mxu0
  %v1423 = vadd.f32 0.0, %v1422
  %v1424 = vpop.f32.mrf.mxu0
  %v1425 = vadd.f32 0.0, %v1424
  %1426 = vmatmul.bf16.gmra.mxu0 %v1361
  %v1427 = vpop.f32.mrf.mxu0
  %v1428 = vadd.f32 0.0, %v1427
  %v1429 = vpop.f32.mrf.mxu0
  %v1430 = vadd.f32 0.0, %v1429
  %1431 = vmatmul.bf16.gmra.mxu0 %v1363
  %v1432 = vpop.f32.mrf.mxu0
  %v1433 = vadd.f32 0.0, %v1432
  %v1434 = vpop.f32.mrf.mxu0
  %v1435 = vadd.f32 0.0, %v1434
  %1436 = vmatmul.bf16.gmra.mxu0 %v1365
  %v1437 = vpop.f32.mrf.mxu0
  %v1438 = vadd.f32 0.0, %v1437
  %v1439 = vpop.f32.mrf.mxu0
  %v1440 = vadd.f32 0.0, %v1439
  %1441 = vmatmul.bf16.gmra.mxu0 %v1367
  %v1442 = vpop.f32.mrf.mxu0
  %v1443 = vadd.f32 0.0, %v1442
  %v1444 = vpop.f32.mrf.mxu0
  %v1445 = vadd.f32 0.0, %v1444
  %1446 = vmatmul.bf16.gmra.mxu0 %v1369
  %v1447 = vpop.f32.mrf.mxu0
  %v1448 = vadd.f32 0.0, %v1447
  %v1449 = vpop.f32.mrf.mxu0
  %v1450 = vadd.f32 0.0, %v1449
  %1451 = vmatmul.bf16.gmra.mxu0 %v1371
  %v1452 = vpop.f32.mrf.mxu0
  %v1453 = vadd.f32 0.0, %v1452
  %v1454 = vpop.f32.mrf.mxu0
  %v1455 = vadd.f32 0.0, %v1454
  %1456 = vmatmul.bf16.gmra.mxu0 %v1373
  %v1457 = vpop.f32.mrf.mxu0
  %v1458 = vadd.f32 0.0, %v1457
  %v1459 = vpop.f32.mrf.mxu0
  %v1460 = vadd.f32 0.0, %v1459
  %1461 = vmatmul.bf16.gmra.mxu0 %v1375
  %v1462 = vpop.f32.mrf.mxu0
  %v1463 = vadd.f32 0.0, %v1462
  %v1464 = vpop.f32.mrf.mxu0
  %v1465 = vadd.f32 0.0, %v1464
  %1466 = vmatmul.bf16.gmra.mxu0 %v1377
  %v1467 = vpop.f32.mrf.mxu0
  %v1468 = vadd.f32 0.0, %v1467
  %v1469 = vpop.f32.mrf.mxu0
  %v1470 = vadd.f32 0.0, %v1469
  %1471 = vdwg.mxu0
  %v1472 = vmax.f32 %v1393, 0.0
  %v1473 = vmax.f32 %v1395, 0.0
  %v1474 = vmax.f32 %v1398, 0.0
  %v1475 = vmax.f32 %v1400, 0.0
  %v1476 = vmax.f32 %v1403, 0.0
  %v1477 = vmax.f32 %v1405, 0.0
  %v1478 = vmax.f32 %v1408, 0.0
  %v1479 = vmax.f32 %v1410, 0.0
  %v1480 = vmax.f32 %v1413, 0.0
  %v1481 = vmax.f32 %v1415, 0.0
  %v1482 = vmax.f32 %v1418, 0.0
  %v1483 = vmax.f32 %v1420, 0.0
  %v1484 = vmax.f32 %v1423, 0.0
  %v1485 = vmax.f32 %v1425, 0.0
  %v1486 = vmax.f32 %v1428, 0.0
  %v1487 = vmax.f32 %v1430, 0.0
  %v1488 = vmax.f32 %v1433, 0.0
  %v1489 = vmax.f32 %v1435, 0.0
  %v1490 = vmax.f32 %v1438, 0.0
  %v1491 = vmax.f32 %v1440, 0.0
  %v1492 = vmax.f32 %v1443, 0.0
  %v1493 = vmax.f32 %v1445, 0.0
  %v1494 = vmax.f32 %v1448, 0.0
  %v1495 = vmax.f32 %v1450, 0.0
  %v1496 = vmax.f32 %v1453, 0.0
  %v1497 = vmax.f32 %v1455, 0.0
  %v1498 = vmax.f32 %v1458, 0.0
  %v1499 = vmax.f32 %v1460, 0.0
  %v1500 = vmax.f32 %v1463, 0.0
  %v1501 = vmax.f32 %v1465, 0.0
  %v1502 = vmax.f32 %v1468, 0.0
  %v1503 = vmax.f32 %v1470, 0.0
  %v1504 = vpack.c.bf16 %v1472, %v1472
  %v1505 = vpack.c.bf16 %v1473, %v1473
  %v1506 = vpack.c.bf16 %v1474, %v1474
  %v1507 = vpack.c.bf16 %v1475, %v1475
  %v1508 = vpack.c.bf16 %v1476, %v1476
  %v1509 = vpack.c.bf16 %v1477, %v1477
  %v1510 = vpack.c.bf16 %v1478, %v1478
  %v1511 = vpack.c.bf16 %v1479, %v1479
  %v1512 = vpack.c.bf16 %v1480, %v1480
  %v1513 = vpack.c.bf16 %v1481, %v1481
  %v1514 = vpack.c.bf16 %v1482, %v1482
  %v1515 = vpack.c.bf16 %v1483, %v1483
  %v1516 = vpack.c.bf16 %v1484, %v1484
  %v1517 = vpack.c.bf16 %v1485, %v1485
  %v1518 = vpack.c.bf16 %v1486, %v1486
  %v1519 = vpack.c.bf16 %v1487, %v1487
  %v1520 = vpack.c.bf16 %v1488, %v1488
  %v1521 = vpack.c.bf16 %v1489, %v1489
  %v1522 = vpack.c.bf16 %v1490, %v1490
  %v1523 = vpack.c.bf16 %v1491, %v1491
  %v1524 = vpack.c.bf16 %v1492, %v1492
  %v1525 = vpack.c.bf16 %v1493, %v1493
  %v1526 = vpack.c.bf16 %v1494, %v1494
  %v1527 = vpack.c.bf16 %v1495, %v1495
  %v1528 = vpack.c.bf16 %v1496, %v1496
  %v1529 = vpack.c.bf16 %v1497, %v1497
  %v1530 = vpack.c.bf16 %v1498, %v1498
  %v1531 = vpack.c.bf16 %v1499, %v1499
  %v1532 = vpack.c.bf16 %v1500, %v1500
  %v1533 = vpack.c.bf16 %v1501, %v1501
  %v1534 = vpack.c.bf16 %v1502, %v1502
  %v1535 = vpack.c.bf16 %v1503, %v1503
  %v1536 = vld [vmem:[%s2] sm:$0xf]
  %v1537 = vld [vmem:[%s2 + $0x4] sm:$0xf]
  %v1538 = vld [vmem:[%s2 + $0x8] sm:$0xf]
  %v1539 = vld [vmem:[%s2 + $0xc] sm:$0xf]
  %v1540 = vld [vmem:[%s2 + $0x10] sm:$0x3]
  %v1573 = vunpack.c.l.b16 %v1504
  %v1574 = vunpack.c.l.b16 %v1505
  %v1575 = vunpack.c.l.b16 %v1506
  %v1576 = vunpack.c.l.b16 %v1507
  %v1577 = vunpack.c.l.b16 %v1508
  %v1578 = vunpack.c.l.b16 %v1509
  %v1579 = vunpack.c.l.b16 %v1510
  %v1580 = vunpack.c.l.b16 %v1511
  %v1581 = vunpack.c.l.b16 %v1512
  %v1582 = vunpack.c.l.b16 %v1513
  %v1583 = vunpack.c.l.b16 %v1514
  %v1584 = vunpack.c.l.b16 %v1515
  %v1585 = vunpack.c.l.b16 %v1516
  %v1586 = vunpack.c.l.b16 %v1517
  %v1587 = vunpack.c.l.b16 %v1518
  %v1588 = vunpack.c.l.b16 %v1519
  %v1589 = vunpack.c.l.b16 %v1520
  %v1590 = vunpack.c.l.b16 %v1521
  %v1591 = vunpack.c.l.b16 %v1522
  %v1592 = vunpack.c.l.b16 %v1523
  %v1593 = vunpack.c.l.b16 %v1524
  %v1594 = vunpack.c.l.b16 %v1525
  %v1595 = vunpack.c.l.b16 %v1526
  %v1596 = vunpack.c.l.b16 %v1527
  %v1597 = vunpack.c.l.b16 %v1528
  %v1598 = vunpack.c.l.b16 %v1529
  %v1599 = vunpack.c.l.b16 %v1530
  %v1600 = vunpack.c.l.b16 %v1531
  %v1601 = vunpack.c.l.b16 %v1532
  %v1602 = vunpack.c.l.b16 %v1533
  %v1603 = vunpack.c.l.b16 %v1534
  %v1604 = vunpack.c.l.b16 %v1535
  %v1605 = vpack.c.b16 %v1574, %v1573
  %v1606 = vpack.c.b16 %v1576, %v1575
  %v1607 = vpack.c.b16 %v1578, %v1577
  %v1608 = vpack.c.b16 %v1580, %v1579
  %v1609 = vpack.c.b16 %v1582, %v1581
  %v1610 = vpack.c.b16 %v1584, %v1583
  %v1611 = vpack.c.b16 %v1586, %v1585
  %v1612 = vpack.c.b16 %v1588, %v1587
  %v1613 = vpack.c.b16 %v1590, %v1589
  %v1614 = vpack.c.b16 %v1592, %v1591
  %v1615 = vpack.c.b16 %v1594, %v1593
  %v1616 = vpack.c.b16 %v1596, %v1595
  %v1617 = vpack.c.b16 %v1598, %v1597
  %v1618 = vpack.c.b16 %v1600, %v1599
  %v1619 = vpack.c.b16 %v1602, %v1601
  %v1620 = vpack.c.b16 %v1604, %v1603
  %v1622 = vshrl.u32 %v1605, 16
  %v1624 = vrot.slane %v1622, 7
  %v1625 = vshll.u32 %v1605, 16
  %v1627 = vor.u32 %v1624, %v1625
  %v1629 = vshrl.u32 %v1606, 16
  %v1631 = vrot.slane %v1629, 7
  %v1632 = vshll.u32 %v1606, 16
  %v1634 = vor.u32 %v1631, %v1632
  %v1636 = vshrl.u32 %v1607, 16
  %v1638 = vrot.slane %v1636, 7
  %v1639 = vshll.u32 %v1607, 16
  %v1641 = vor.u32 %v1638, %v1639
  %v1643 = vshrl.u32 %v1608, 16
  %v1645 = vrot.slane %v1643, 7
  %v1646 = vshll.u32 %v1608, 16
  %v1648 = vor.u32 %v1645, %v1646
  %v1650 = vshrl.u32 %v1609, 16
  %v1652 = vrot.slane %v1650, 7
  %v1653 = vshll.u32 %v1609, 16
  %v1655 = vor.u32 %v1652, %v1653
  %v1657 = vshrl.u32 %v1610, 16
  %v1659 = vrot.slane %v1657, 7
  %v1660 = vshll.u32 %v1610, 16
  %v1662 = vor.u32 %v1659, %v1660
  %v1664 = vshrl.u32 %v1611, 16
  %v1666 = vrot.slane %v1664, 7
  %v1667 = vshll.u32 %v1611, 16
  %v1669 = vor.u32 %v1666, %v1667
  %v1671 = vshrl.u32 %v1612, 16
  %v1673 = vrot.slane %v1671, 7
  %v1674 = vshll.u32 %v1612, 16
  %v1676 = vor.u32 %v1673, %v1674
  %v1678 = vshrl.u32 %v1613, 16
  %v1680 = vrot.slane %v1678, 7
  %v1681 = vshll.u32 %v1613, 16
  %v1683 = vor.u32 %v1680, %v1681
  %v1685 = vshrl.u32 %v1614, 16
  %v1687 = vrot.slane %v1685, 7
  %v1688 = vshll.u32 %v1614, 16
  %v1690 = vor.u32 %v1687, %v1688
  %v1692 = vshrl.u32 %v1615, 16
  %v1694 = vrot.slane %v1692, 7
  %v1695 = vshll.u32 %v1615, 16
  %v1697 = vor.u32 %v1694, %v1695
  %v1699 = vshrl.u32 %v1616, 16
  %v1701 = vrot.slane %v1699, 7
  %v1702 = vshll.u32 %v1616, 16
  %v1704 = vor.u32 %v1701, %v1702
  %v1706 = vshrl.u32 %v1617, 16
  %v1708 = vrot.slane %v1706, 7
  %v1709 = vshll.u32 %v1617, 16
  %v1711 = vor.u32 %v1708, %v1709
  %v1713 = vshrl.u32 %v1618, 16
  %v1715 = vrot.slane %v1713, 7
  %v1716 = vshll.u32 %v1618, 16
  %v1718 = vor.u32 %v1715, %v1716
  %v1720 = vshrl.u32 %v1619, 16
  %v1722 = vrot.slane %v1720, 7
  %v1723 = vshll.u32 %v1619, 16
  %v1725 = vor.u32 %v1722, %v1723
  %v1727 = vshrl.u32 %v1620, 16
  %v1729 = vrot.slane %v1727, 7
  %v1730 = vshll.u32 %v1620, 16
  %v1732 = vor.u32 %v1729, %v1730
  %v1765 = vsel %vm543, 0, %v1627
  %v1766 = vsel %vm543, 0, %v1634
  %v1767 = vsel %vm543, 0, %v1641
  %v1768 = vsel %vm543, 0, %v1648
  %v1769 = vsel %vm543, 0, %v1655
  %v1770 = vsel %vm543, 0, %v1662
  %v1771 = vsel %vm543, 0, %v1669
  %v1772 = vsel %vm543, 0, %v1676
  %v1773 = vsel %vm543, 0, %v1683
  %v1774 = vsel %vm543, 0, %v1690
  %v1775 = vsel %vm543, 0, %v1697
  %v1776 = vsel %vm543, 0, %v1704
  %v1777 = vsel %vm543, 0, %v1711
  %v1778 = vsel %vm543, 0, %v1718
  %v1779 = vsel %vm543, 0, %v1725
  %v1780 = vsel %vm543, 0, %v1732
  %v1781 = vsel %vm543, %v1624, 0
  %v1782 = vsel %vm543, %v1631, 0
  %v1783 = vsel %vm543, %v1638, 0
  %v1784 = vsel %vm543, %v1645, 0
  %v1785 = vsel %vm543, %v1652, 0
  %v1786 = vsel %vm543, %v1659, 0
  %v1787 = vsel %vm543, %v1666, 0
  %v1788 = vsel %vm543, %v1673, 0
  %v1789 = vsel %vm543, %v1680, 0
  %v1790 = vsel %vm543, %v1687, 0
  %v1791 = vsel %vm543, %v1694, 0
  %v1792 = vsel %vm543, %v1701, 0
  %v1793 = vsel %vm543, %v1708, 0
  %v1794 = vsel %vm543, %v1715, 0
  %v1795 = vsel %vm543, %v1722, 0
  %v1796 = vsel %vm543, %v1729, 0
  %1813 = vrot.lane.b32.xlu0 %v1765, 4
  %v1814 = vpop.permute.xlu0 %1813
  %1815 = vrot.lane.b32.xlu0 %v1781, 4
  %v1816 = vpop.permute.xlu0 %1815
  %1817 = vrot.lane.b32.xlu0 %v1767, 4
  %v1818 = vpop.permute.xlu0 %1817
  %1819 = vrot.lane.b32.xlu0 %v1783, 4
  %v1820 = vpop.permute.xlu0 %1819
  %1821 = vrot.lane.b32.xlu0 %v1769, 4
  %v1822 = vpop.permute.xlu0 %1821
  %1823 = vrot.lane.b32.xlu0 %v1785, 4
  %v1824 = vpop.permute.xlu0 %1823
  %1825 = vrot.lane.b32.xlu0 %v1771, 4
  %v1826 = vpop.permute.xlu0 %1825
  %1827 = vrot.lane.b32.xlu0 %v1787, 4
  %v1828 = vpop.permute.xlu0 %1827
  %1829 = vrot.lane.b32.xlu0 %v1773, 4
  %v1830 = vpop.permute.xlu0 %1829
  %1831 = vrot.lane.b32.xlu0 %v1789, 4
  %v1832 = vpop.permute.xlu0 %1831
  %1833 = vrot.lane.b32.xlu0 %v1775, 4
  %v1834 = vpop.permute.xlu0 %1833
  %1835 = vrot.lane.b32.xlu0 %v1791, 4
  %v1836 = vpop.permute.xlu0 %1835
  %1837 = vrot.lane.b32.xlu0 %v1777, 4
  %v1838 = vpop.permute.xlu0 %1837
  %1839 = vrot.lane.b32.xlu0 %v1793, 4
  %v1840 = vpop.permute.xlu0 %1839
  %1841 = vrot.lane.b32.xlu0 %v1779, 4
  %v1842 = vpop.permute.xlu0 %1841
  %1843 = vrot.lane.b32.xlu0 %v1795, 4
  %v1844 = vpop.permute.xlu0 %1843
  %1861 = vrot.lane.b32.xlu0 %v1766, 8
  %v1862 = vpop.permute.xlu0 %1861
  %1863 = vrot.lane.b32.xlu0 %v1782, 8
  %v1864 = vpop.permute.xlu0 %1863
  %1865 = vrot.lane.b32.xlu0 %v1768, 8
  %v1866 = vpop.permute.xlu0 %1865
  %1867 = vrot.lane.b32.xlu0 %v1784, 8
  %v1868 = vpop.permute.xlu0 %1867
  %1869 = vrot.lane.b32.xlu0 %v1770, 8
  %v1870 = vpop.permute.xlu0 %1869
  %1871 = vrot.lane.b32.xlu0 %v1786, 8
  %v1872 = vpop.permute.xlu0 %1871
  %1873 = vrot.lane.b32.xlu0 %v1772, 8
  %v1874 = vpop.permute.xlu0 %1873
  %1875 = vrot.lane.b32.xlu0 %v1788, 8
  %v1876 = vpop.permute.xlu0 %1875
  %1877 = vrot.lane.b32.xlu0 %v1774, 8
  %v1878 = vpop.permute.xlu0 %1877
  %1879 = vrot.lane.b32.xlu0 %v1790, 8
  %v1880 = vpop.permute.xlu0 %1879
  %1881 = vrot.lane.b32.xlu0 %v1776, 8
  %v1882 = vpop.permute.xlu0 %1881
  %1883 = vrot.lane.b32.xlu0 %v1792, 8
  %v1884 = vpop.permute.xlu0 %1883
  %1885 = vrot.lane.b32.xlu0 %v1778, 8
  %v1886 = vpop.permute.xlu0 %1885
  %1887 = vrot.lane.b32.xlu0 %v1794, 8
  %v1888 = vpop.permute.xlu0 %1887
  %1889 = vrot.lane.b32.xlu0 %v1780, 8
  %v1890 = vpop.permute.xlu0 %1889
  %1891 = vrot.lane.b32.xlu0 %v1796, 8
  %v1892 = vpop.permute.xlu0 %1891
  %v1894 = vsel %vm800, 0, %v1814
  %v1896 = vsel %vm800, 0, %v1816
  %v1899 = vsel %vm800, %v1766, %v1818
  %v1902 = vsel %vm800, %v1782, %v1820
  %v1905 = vsel %vm800, %v1768, %v1822
  %v1908 = vsel %vm800, %v1784, %v1824
  %v1911 = vsel %vm800, %v1770, %v1826
  %v1914 = vsel %vm800, %v1786, %v1828
  %v1916 = vsel %vm800, 0, %v1830
  %v1918 = vsel %vm800, 0, %v1832
  %v1921 = vsel %vm800, %v1774, %v1834
  %v1924 = vsel %vm800, %v1790, %v1836
  %v1927 = vsel %vm800, %v1776, %v1838
  %v1930 = vsel %vm800, %v1792, %v1840
  %v1933 = vsel %vm800, %v1778, %v1842
  %v1936 = vsel %vm800, %v1794, %v1844
  %v1938 = vsel %vm894, %v1894, %v1862
  %v1940 = vsel %vm894, %v1896, %v1864
  %v1942 = vsel %vm894, %v1899, %v1866
  %v1944 = vsel %vm894, %v1902, %v1868
  %v1946 = vsel %vm894, %v1905, %v1870
  %v1948 = vsel %vm894, %v1908, %v1872
  %v1950 = vsel %vm894, %v1911, %v1874
  %v1952 = vsel %vm894, %v1914, %v1876
  %v1954 = vsel %vm894, %v1916, %v1878
  %v1956 = vsel %vm894, %v1918, %v1880
  %v1958 = vsel %vm894, %v1921, %v1882
  %v1960 = vsel %vm894, %v1924, %v1884
  %v1962 = vsel %vm894, %v1927, %v1886
  %v1964 = vsel %vm894, %v1930, %v1888
  %v1966 = vsel %vm894, %v1933, %v1890
  %v1968 = vsel %vm894, %v1936, %v1892
  %v1969 = vshrl.u32 %v1938, 16
  %v1971 = vshll.u32 %v1938, 16
  %v1973 = vrot.slane %v1971, 1
  %v1974 = vor.u32 %v1969, %v1973
  %v1975 = vshll.u32 %v1940, 16
  %v1977 = vrot.slane %v1975, 1
  %v1978 = vsel %vm959, %v1974, %v1977
  %v1979 = vshrl.u32 %v1942, 16
  %v1981 = vshll.u32 %v1942, 16
  %v1983 = vrot.slane %v1981, 1
  %v1984 = vor.u32 %v1979, %v1983
  %v1985 = vshll.u32 %v1944, 16
  %v1987 = vrot.slane %v1985, 1
  %v1988 = vsel %vm959, %v1984, %v1987
  %v1989 = vshrl.u32 %v1946, 16
  %v1991 = vshll.u32 %v1946, 16
  %v1993 = vrot.slane %v1991, 1
  %v1994 = vor.u32 %v1989, %v1993
  %v1995 = vshll.u32 %v1948, 16
  %v1997 = vrot.slane %v1995, 1
  %v1998 = vsel %vm959, %v1994, %v1997
  %v1999 = vshrl.u32 %v1950, 16
  %v2001 = vshll.u32 %v1950, 16
  %v2003 = vrot.slane %v2001, 1
  %v2004 = vor.u32 %v1999, %v2003
  %v2005 = vshll.u32 %v1952, 16
  %v2007 = vrot.slane %v2005, 1
  %v2008 = vsel %vm959, %v2004, %v2007
  %v2009 = vshrl.u32 %v1954, 16
  %v2011 = vshll.u32 %v1954, 16
  %v2013 = vrot.slane %v2011, 1
  %v2014 = vor.u32 %v2009, %v2013
  %v2015 = vshll.u32 %v1956, 16
  %v2017 = vrot.slane %v2015, 1
  %v2018 = vsel %vm959, %v2014, %v2017
  %v2019 = vshrl.u32 %v1958, 16
  %v2021 = vshll.u32 %v1958, 16
  %v2023 = vrot.slane %v2021, 1
  %v2024 = vor.u32 %v2019, %v2023
  %v2025 = vshll.u32 %v1960, 16
  %v2027 = vrot.slane %v2025, 1
  %v2028 = vsel %vm959, %v2024, %v2027
  %v2029 = vshrl.u32 %v1962, 16
  %v2031 = vshll.u32 %v1962, 16
  %v2033 = vrot.slane %v2031, 1
  %v2034 = vor.u32 %v2029, %v2033
  %v2035 = vshll.u32 %v1964, 16
  %v2037 = vrot.slane %v2035, 1
  %v2038 = vsel %vm959, %v2034, %v2037
  %v2039 = vshrl.u32 %v1966, 16
  %v2041 = vshll.u32 %v1966, 16
  %v2043 = vrot.slane %v2041, 1
  %v2044 = vor.u32 %v2039, %v2043
  %v2045 = vshll.u32 %v1968, 16
  %v2047 = vrot.slane %v2045, 1
  %v2048 = vsel %vm959, %v2044, %v2047
  %2049 = vrot.lane.b32.xlu0 %v1978, 12
  %v2050 = vpop.permute.xlu0 %2049
  %2051 = vrot.lane.b32.xlu0 %v1988, 12
  %v2052 = vpop.permute.xlu0 %2051
  %2053 = vrot.lane.b32.xlu0 %v1998, 12
  %v2054 = vpop.permute.xlu0 %2053
  %2055 = vrot.lane.b32.xlu0 %v2008, 12
  %v2056 = vpop.permute.xlu0 %2055
  %2057 = vrot.lane.b32.xlu0 %v2018, 12
  %v2058 = vpop.permute.xlu0 %2057
  %2059 = vrot.lane.b32.xlu0 %v2028, 12
  %v2060 = vpop.permute.xlu0 %2059
  %2061 = vrot.lane.b32.xlu0 %v2038, 12
  %v2062 = vpop.permute.xlu0 %2061
  %2063 = vrot.lane.b32.xlu0 %v2048, 12
  %v2064 = vpop.permute.xlu0 %2063
  %v2081 = vrot.slane %v1938, 1
  %v2082 = vrot.slane %v1940, 1
  %v2083 = vsel %vm1184, %v2081, %v2082
  %v2084 = vrot.slane %v1942, 1
  %v2085 = vrot.slane %v1944, 1
  %v2086 = vsel %vm1184, %v2084, %v2085
  %v2087 = vrot.slane %v1946, 1
  %v2088 = vrot.slane %v1948, 1
  %v2089 = vsel %vm1184, %v2087, %v2088
  %v2090 = vrot.slane %v1950, 1
  %v2091 = vrot.slane %v1952, 1
  %v2092 = vsel %vm1184, %v2090, %v2091
  %v2093 = vrot.slane %v1954, 1
  %v2094 = vrot.slane %v1956, 1
  %v2095 = vsel %vm1184, %v2093, %v2094
  %v2096 = vrot.slane %v1958, 1
  %v2097 = vrot.slane %v1960, 1
  %v2098 = vsel %vm1184, %v2096, %v2097
  %v2099 = vrot.slane %v1962, 1
  %v2100 = vrot.slane %v1964, 1
  %v2101 = vsel %vm1184, %v2099, %v2100
  %v2102 = vrot.slane %v1966, 1
  %v2103 = vrot.slane %v1968, 1
  %v2104 = vsel %vm1184, %v2102, %v2103
  %2105 = vrot.lane.b32.xlu0 %v2083, 24
  %v2106 = vpop.permute.xlu0 %2105
  %2107 = vrot.lane.b32.xlu0 %v2086, 24
  %v2108 = vpop.permute.xlu0 %2107
  %2109 = vrot.lane.b32.xlu0 %v2089, 24
  %v2110 = vpop.permute.xlu0 %2109
  %2111 = vrot.lane.b32.xlu0 %v2092, 24
  %v2112 = vpop.permute.xlu0 %2111
  %2113 = vrot.lane.b32.xlu0 %v2095, 24
  %v2114 = vpop.permute.xlu0 %2113
  %2115 = vrot.lane.b32.xlu0 %v2098, 24
  %v2116 = vpop.permute.xlu0 %2115
  %2117 = vrot.lane.b32.xlu0 %v2101, 24
  %v2118 = vpop.permute.xlu0 %2117
  %2119 = vrot.lane.b32.xlu0 %v2104, 24
  %v2120 = vpop.permute.xlu0 %2119
  %v2122 = vsel %vm1265, %v1938, %v2050
  %v2124 = vsel %vm1265, %v1942, %v2052
  %v2126 = vsel %vm1265, %v1946, %v2054
  %v2128 = vsel %vm1265, %v1950, %v2056
  %v2130 = vsel %vm1265, %v1954, %v2058
  %v2132 = vsel %vm1265, %v1958, %v2060
  %v2134 = vsel %vm1265, %v1962, %v2062
  %v2136 = vsel %vm1265, %v1966, %v2064
  %v2138 = vsel %vm1298, %v2122, %v2106
  %v2140 = vsel %vm1298, %v2124, %v2108
  %v2142 = vsel %vm1298, %v2126, %v2110
  %v2144 = vsel %vm1298, %v2128, %v2112
  %v2146 = vsel %vm1298, %v2130, %v2114
  %v2148 = vsel %vm1298, %v2132, %v2116
  %v2150 = vsel %vm1298, %v2134, %v2118
  %v2152 = vsel %vm1298, %v2136, %v2120
  %v2158 = vunpack.c.l.b16 %v1536
  %v2159 = vunpack.c.l.b16 %v1537
  %v2160 = vunpack.c.l.b16 %v1538
  %v2161 = vunpack.c.l.b16 %v1539
  %v2162 = vunpack.c.l.b16 %v1540
  %v2163 = vpack.c.b16 %v2159, %v2158
  %v2164 = vpack.c.b16 %v2161, %v2160
  %v2165 = vpack.c.b16 %v2162, %v2162
  %v2168 = vsel %vm1346, %v2138, 0
  %v2170 = vsel %vm1346, %v2140, 0
  %v2172 = vsel %vm1346, %v2142, 0
  %v2174 = vsel %vm1346, %v2144, 0
  %v2176 = vsel %vm1346, %v2146, 0
  %v2178 = vsel %vm1346, %v2148, 0
  %v2180 = vsel %vm1346, %v2150, 0
  %v2182 = vsel %vm1346, %v2152, 0
  %v2185 = vsel %vm1379, %v2165, 0
  %2187 = vmatpush.bf16.msra.mxu0 0
  %2188 = vmatpush.bf16.msra.mxu0 0
  %2189 = vmatpush.bf16.msra.mxu0 0
  %2190 = vmatpush.bf16.msra.mxu0 0
  %2191 = vmatpush.bf16.msra.mxu0 0
  %2192 = vmatpush.bf16.msra.mxu0 %v2185
  %2193 = vmatpush.bf16.msra.mxu0 %v2164
  %2194 = vmatpush.bf16.msra.mxu0 %v2163
  %2195 = vmatmul.bf16.gmra.mxu0 %v2168
  %v2196 = vpop.f32.mrf.mxu0
  %v2197 = vadd.f32 0.0, %v2196
  %v2198 = vpop.f32.mrf.mxu0
  %v2199 = vadd.f32 0.0, %v2198
  %2200 = vmatmul.bf16.gmra.mxu0 %v2170
  %v2201 = vpop.f32.mrf.mxu0
  %v2202 = vadd.f32 0.0, %v2201
  %v2203 = vpop.f32.mrf.mxu0
  %v2204 = vadd.f32 0.0, %v2203
  %2205 = vmatmul.bf16.gmra.mxu0 %v2172
  %v2206 = vpop.f32.mrf.mxu0
  %v2207 = vadd.f32 0.0, %v2206
  %v2208 = vpop.f32.mrf.mxu0
  %v2209 = vadd.f32 0.0, %v2208
  %2210 = vmatmul.bf16.gmra.mxu0 %v2174
  %v2211 = vpop.f32.mrf.mxu0
  %v2212 = vadd.f32 0.0, %v2211
  %v2213 = vpop.f32.mrf.mxu0
  %v2214 = vadd.f32 0.0, %v2213
  %2215 = vmatmul.bf16.gmra.mxu0 %v2176
  %v2216 = vpop.f32.mrf.mxu0
  %v2217 = vadd.f32 0.0, %v2216
  %v2218 = vpop.f32.mrf.mxu0
  %v2219 = vadd.f32 0.0, %v2218
  %2220 = vmatmul.bf16.gmra.mxu0 %v2178
  %v2221 = vpop.f32.mrf.mxu0
  %v2222 = vadd.f32 0.0, %v2221
  %v2223 = vpop.f32.mrf.mxu0
  %v2224 = vadd.f32 0.0, %v2223
  %2225 = vmatmul.bf16.gmra.mxu0 %v2180
  %v2226 = vpop.f32.mrf.mxu0
  %v2227 = vadd.f32 0.0, %v2226
  %v2228 = vpop.f32.mrf.mxu0
  %v2229 = vadd.f32 0.0, %v2228
  %2230 = vmatmul.bf16.gmra.mxu0 %v2182
  %v2231 = vpop.f32.mrf.mxu0
  %v2232 = vadd.f32 0.0, %v2231
  %v2233 = vpop.f32.mrf.mxu0
  %v2234 = vadd.f32 0.0, %v2233
  %2235 = vdwg.mxu0
  %v2236 = vmax.f32 %v2197, 0.0
  %v2237 = vmax.f32 %v2199, 0.0
  %v2238 = vmax.f32 %v2202, 0.0
  %v2239 = vmax.f32 %v2204, 0.0
  %v2240 = vmax.f32 %v2207, 0.0
  %v2241 = vmax.f32 %v2209, 0.0
  %v2242 = vmax.f32 %v2212, 0.0
  %v2243 = vmax.f32 %v2214, 0.0
  %v2244 = vmax.f32 %v2217, 0.0
  %v2245 = vmax.f32 %v2219, 0.0
  %v2246 = vmax.f32 %v2222, 0.0
  %v2247 = vmax.f32 %v2224, 0.0
  %v2248 = vmax.f32 %v2227, 0.0
  %v2249 = vmax.f32 %v2229, 0.0
  %v2250 = vmax.f32 %v2232, 0.0
  %v2251 = vmax.f32 %v2234, 0.0
  %v2252 = vpack.c.bf16 %v2236, %v2236
  %v2253 = vpack.c.bf16 %v2237, %v2237
  %v2254 = vpack.c.bf16 %v2238, %v2238
  %v2255 = vpack.c.bf16 %v2239, %v2239
  %v2256 = vpack.c.bf16 %v2240, %v2240
  %v2257 = vpack.c.bf16 %v2241, %v2241
  %v2258 = vpack.c.bf16 %v2242, %v2242
  %v2259 = vpack.c.bf16 %v2243, %v2243
  %v2260 = vpack.c.bf16 %v2244, %v2244
  %v2261 = vpack.c.bf16 %v2245, %v2245
  %v2262 = vpack.c.bf16 %v2246, %v2246
  %v2263 = vpack.c.bf16 %v2247, %v2247
  %v2264 = vpack.c.bf16 %v2248, %v2248
  %v2265 = vpack.c.bf16 %v2249, %v2249
  %v2266 = vpack.c.bf16 %v2250, %v2250
  %v2267 = vpack.c.bf16 %v2251, %v2251
  %v2268 = vld [vmem:[%s3] sm:$0xf]
  %v2269 = vld [vmem:[%s3 + $0x4] sm:$0x3]
  %v2286 = vunpack.c.l.b16 %v2252
  %v2287 = vunpack.c.l.b16 %v2253
  %v2288 = vunpack.c.l.b16 %v2254
  %v2289 = vunpack.c.l.b16 %v2255
  %v2290 = vunpack.c.l.b16 %v2256
  %v2291 = vunpack.c.l.b16 %v2257
  %v2292 = vunpack.c.l.b16 %v2258
  %v2293 = vunpack.c.l.b16 %v2259
  %v2294 = vunpack.c.l.b16 %v2260
  %v2295 = vunpack.c.l.b16 %v2261
  %v2296 = vunpack.c.l.b16 %v2262
  %v2297 = vunpack.c.l.b16 %v2263
  %v2298 = vunpack.c.l.b16 %v2264
  %v2299 = vunpack.c.l.b16 %v2265
  %v2300 = vunpack.c.l.b16 %v2266
  %v2301 = vunpack.c.l.b16 %v2267
  %v2302 = vpack.c.b16 %v2287, %v2286
  %v2303 = vpack.c.b16 %v2289, %v2288
  %v2304 = vpack.c.b16 %v2291, %v2290
  %v2305 = vpack.c.b16 %v2293, %v2292
  %v2306 = vpack.c.b16 %v2295, %v2294
  %v2307 = vpack.c.b16 %v2297, %v2296
  %v2308 = vpack.c.b16 %v2299, %v2298
  %v2309 = vpack.c.b16 %v2301, %v2300
  %v2311 = vshrl.u32 %v2302, 16
  %v2313 = vrot.slane %v2311, 7
  %v2314 = vshll.u32 %v2302, 16
  %v2316 = vor.u32 %v2313, %v2314
  %v2318 = vshrl.u32 %v2303, 16
  %v2320 = vrot.slane %v2318, 7
  %v2321 = vshll.u32 %v2303, 16
  %v2323 = vor.u32 %v2320, %v2321
  %v2325 = vshrl.u32 %v2304, 16
  %v2327 = vrot.slane %v2325, 7
  %v2328 = vshll.u32 %v2304, 16
  %v2330 = vor.u32 %v2327, %v2328
  %v2332 = vshrl.u32 %v2305, 16
  %v2334 = vrot.slane %v2332, 7
  %v2335 = vshll.u32 %v2305, 16
  %v2337 = vor.u32 %v2334, %v2335
  %v2339 = vshrl.u32 %v2306, 16
  %v2341 = vrot.slane %v2339, 7
  %v2342 = vshll.u32 %v2306, 16
  %v2344 = vor.u32 %v2341, %v2342
  %v2346 = vshrl.u32 %v2307, 16
  %v2348 = vrot.slane %v2346, 7
  %v2349 = vshll.u32 %v2307, 16
  %v2351 = vor.u32 %v2348, %v2349
  %v2353 = vshrl.u32 %v2308, 16
  %v2355 = vrot.slane %v2353, 7
  %v2356 = vshll.u32 %v2308, 16
  %v2358 = vor.u32 %v2355, %v2356
  %v2360 = vshrl.u32 %v2309, 16
  %v2362 = vrot.slane %v2360, 7
  %v2363 = vshll.u32 %v2309, 16
  %v2365 = vor.u32 %v2362, %v2363
  %v2382 = vsel %vm543, 0, %v2316
  %v2383 = vsel %vm543, 0, %v2323
  %v2384 = vsel %vm543, 0, %v2330
  %v2385 = vsel %vm543, 0, %v2337
  %v2386 = vsel %vm543, 0, %v2344
  %v2387 = vsel %vm543, 0, %v2351
  %v2388 = vsel %vm543, 0, %v2358
  %v2389 = vsel %vm543, 0, %v2365
  %v2390 = vsel %vm543, %v2313, 0
  %v2391 = vsel %vm543, %v2320, 0
  %v2392 = vsel %vm543, %v2327, 0
  %v2393 = vsel %vm543, %v2334, 0
  %v2394 = vsel %vm543, %v2341, 0
  %v2395 = vsel %vm543, %v2348, 0
  %v2396 = vsel %vm543, %v2355, 0
  %v2397 = vsel %vm543, %v2362, 0
  %v2399 = vshrl.u32 %v2382, 16
  %v2401 = vshll.u32 %v2382, 16
  %v2403 = vrot.slane %v2401, 1
  %v2404 = vor.u32 %v2399, %v2403
  %v2406 = vshll.u32 %v2390, 16
  %v2408 = vrot.slane %v2406, 1
  %v2409 = vsel %vm959, %v2404, %v2408
  %v2411 = vshrl.u32 %v2383, 16
  %v2413 = vshll.u32 %v2383, 16
  %v2415 = vrot.slane %v2413, 1
  %v2416 = vor.u32 %v2411, %v2415
  %v2418 = vshll.u32 %v2391, 16
  %v2420 = vrot.slane %v2418, 1
  %v2421 = vsel %vm959, %v2416, %v2420
  %v2423 = vshrl.u32 %v2384, 16
  %v2425 = vshll.u32 %v2384, 16
  %v2427 = vrot.slane %v2425, 1
  %v2428 = vor.u32 %v2423, %v2427
  %v2430 = vshll.u32 %v2392, 16
  %v2432 = vrot.slane %v2430, 1
  %v2433 = vsel %vm959, %v2428, %v2432
  %v2435 = vshrl.u32 %v2385, 16
  %v2437 = vshll.u32 %v2385, 16
  %v2439 = vrot.slane %v2437, 1
  %v2440 = vor.u32 %v2435, %v2439
  %v2442 = vshll.u32 %v2393, 16
  %v2444 = vrot.slane %v2442, 1
  %v2445 = vsel %vm959, %v2440, %v2444
  %v2447 = vshrl.u32 %v2386, 16
  %v2449 = vshll.u32 %v2386, 16
  %v2451 = vrot.slane %v2449, 1
  %v2452 = vor.u32 %v2447, %v2451
  %v2454 = vshll.u32 %v2394, 16
  %v2456 = vrot.slane %v2454, 1
  %v2457 = vsel %vm959, %v2452, %v2456
  %v2459 = vshrl.u32 %v2387, 16
  %v2461 = vshll.u32 %v2387, 16
  %v2463 = vrot.slane %v2461, 1
  %v2464 = vor.u32 %v2459, %v2463
  %v2466 = vshll.u32 %v2395, 16
  %v2468 = vrot.slane %v2466, 1
  %v2469 = vsel %vm959, %v2464, %v2468
  %v2471 = vshrl.u32 %v2388, 16
  %v2473 = vshll.u32 %v2388, 16
  %v2475 = vrot.slane %v2473, 1
  %v2476 = vor.u32 %v2471, %v2475
  %v2478 = vshll.u32 %v2396, 16
  %v2480 = vrot.slane %v2478, 1
  %v2481 = vsel %vm959, %v2476, %v2480
  %v2483 = vshrl.u32 %v2389, 16
  %v2485 = vshll.u32 %v2389, 16
  %v2487 = vrot.slane %v2485, 1
  %v2488 = vor.u32 %v2483, %v2487
  %v2490 = vshll.u32 %v2397, 16
  %v2492 = vrot.slane %v2490, 1
  %v2493 = vsel %vm959, %v2488, %v2492
  %2494 = vrot.lane.b32.xlu0 %v2409, 4
  %v2495 = vpop.permute.xlu0 %2494
  %2496 = vrot.lane.b32.xlu0 %v2421, 4
  %v2497 = vpop.permute.xlu0 %2496
  %2498 = vrot.lane.b32.xlu0 %v2433, 4
  %v2499 = vpop.permute.xlu0 %2498
  %2500 = vrot.lane.b32.xlu0 %v2445, 4
  %v2501 = vpop.permute.xlu0 %2500
  %2502 = vrot.lane.b32.xlu0 %v2457, 4
  %v2503 = vpop.permute.xlu0 %2502
  %2504 = vrot.lane.b32.xlu0 %v2469, 4
  %v2505 = vpop.permute.xlu0 %2504
  %2506 = vrot.lane.b32.xlu0 %v2481, 4
  %v2507 = vpop.permute.xlu0 %2506
  %2508 = vrot.lane.b32.xlu0 %v2493, 4
  %v2509 = vpop.permute.xlu0 %2508
  %v2526 = vrot.slane %v2382, 1
  %v2527 = vrot.slane %v2390, 1
  %v2528 = vsel %vm1184, %v2526, %v2527
  %v2529 = vrot.slane %v2383, 1
  %v2530 = vrot.slane %v2391, 1
  %v2531 = vsel %vm1184, %v2529, %v2530
  %v2532 = vrot.slane %v2384, 1
  %v2533 = vrot.slane %v2392, 1
  %v2534 = vsel %vm1184, %v2532, %v2533
  %v2535 = vrot.slane %v2385, 1
  %v2536 = vrot.slane %v2393, 1
  %v2537 = vsel %vm1184, %v2535, %v2536
  %v2538 = vrot.slane %v2386, 1
  %v2539 = vrot.slane %v2394, 1
  %v2540 = vsel %vm1184, %v2538, %v2539
  %v2541 = vrot.slane %v2387, 1
  %v2542 = vrot.slane %v2395, 1
  %v2543 = vsel %vm1184, %v2541, %v2542
  %v2544 = vrot.slane %v2388, 1
  %v2545 = vrot.slane %v2396, 1
  %v2546 = vsel %vm1184, %v2544, %v2545
  %v2547 = vrot.slane %v2389, 1
  %v2548 = vrot.slane %v2397, 1
  %v2549 = vsel %vm1184, %v2547, %v2548
  %2550 = vrot.lane.b32.xlu0 %v2528, 8
  %v2551 = vpop.permute.xlu0 %2550
  %2552 = vrot.lane.b32.xlu0 %v2531, 8
  %v2553 = vpop.permute.xlu0 %2552
  %2554 = vrot.lane.b32.xlu0 %v2534, 8
  %v2555 = vpop.permute.xlu0 %2554
  %2556 = vrot.lane.b32.xlu0 %v2537, 8
  %v2557 = vpop.permute.xlu0 %2556
  %2558 = vrot.lane.b32.xlu0 %v2540, 8
  %v2559 = vpop.permute.xlu0 %2558
  %2560 = vrot.lane.b32.xlu0 %v2543, 8
  %v2561 = vpop.permute.xlu0 %2560
  %2562 = vrot.lane.b32.xlu0 %v2546, 8
  %v2563 = vpop.permute.xlu0 %2562
  %2564 = vrot.lane.b32.xlu0 %v2549, 8
  %v2565 = vpop.permute.xlu0 %2564
  %v2567 = vsel %vm800, %v2382, %v2495
  %v2569 = vsel %vm800, %v2383, %v2497
  %v2571 = vsel %vm800, %v2384, %v2499
  %v2573 = vsel %vm800, %v2385, %v2501
  %v2575 = vsel %vm800, %v2386, %v2503
  %v2577 = vsel %vm800, %v2387, %v2505
  %v2579 = vsel %vm800, %v2388, %v2507
  %v2581 = vsel %vm800, %v2389, %v2509
  %v2583 = vsel %vm894, %v2567, %v2551
  %v2585 = vsel %vm894, %v2569, %v2553
  %v2587 = vsel %vm894, %v2571, %v2555
  %v2589 = vsel %vm894, %v2573, %v2557
  %v2591 = vsel %vm894, %v2575, %v2559
  %v2593 = vsel %vm894, %v2577, %v2561
  %v2595 = vsel %vm894, %v2579, %v2563
  %v2597 = vsel %vm894, %v2581, %v2565
  %v2600 = vunpack.c.l.b16 %v2268
  %v2601 = vunpack.c.l.b16 %v2269
  %v2602 = vpack.c.b16 %v2601, %v2600
  %v2603 = vsel %vm1265, %v2583, 0
  %v2605 = vsel %vm1265, %v2585, 0
  %v2607 = vsel %vm1265, %v2587, 0
  %v2609 = vsel %vm1265, %v2589, 0
  %v2611 = vsel %vm1265, %v2591, 0
  %v2613 = vsel %vm1265, %v2593, 0
  %v2615 = vsel %vm1265, %v2595, 0
  %v2617 = vsel %vm1265, %v2597, 0
  %vm2619 = vcmask 1045504
  %v2621 = vsel %vm2619, %v2602, 0
  %2623 = vmatpush.bf16.msra.mxu0 0
  %2624 = vmatpush.bf16.msra.mxu0 0
  %2625 = vmatpush.bf16.msra.mxu0 0
  %2626 = vmatpush.bf16.msra.mxu0 0
  %2627 = vmatpush.bf16.msra.mxu0 0
  %2628 = vmatpush.bf16.msra.mxu0 0
  %2629 = vmatpush.bf16.msra.mxu0 0
  %2630 = vmatpush.bf16.msra.mxu0 %v2621
  %2631 = vmatmul.bf16.gmra.mxu0 %v2603
  %v2632 = vpop.f32.mrf.mxu0
  %v2633 = vadd.f32 0.0, %v2632
  %v2634 = vpop.f32.mrf.mxu0
  %v2635 = vadd.f32 0.0, %v2634
  %2636 = vmatmul.bf16.gmra.mxu0 %v2605
  %v2637 = vpop.f32.mrf.mxu0
  %v2638 = vadd.f32 0.0, %v2637
  %v2639 = vpop.f32.mrf.mxu0
  %v2640 = vadd.f32 0.0, %v2639
  %2641 = vmatmul.bf16.gmra.mxu0 %v2607
  %v2642 = vpop.f32.mrf.mxu0
  %v2643 = vadd.f32 0.0, %v2642
  %v2644 = vpop.f32.mrf.mxu0
  %v2645 = vadd.f32 0.0, %v2644
  %2646 = vmatmul.bf16.gmra.mxu0 %v2609
  %v2647 = vpop.f32.mrf.mxu0
  %v2648 = vadd.f32 0.0, %v2647
  %v2649 = vpop.f32.mrf.mxu0
  %v2650 = vadd.f32 0.0, %v2649
  %2651 = vmatmul.bf16.gmra.mxu0 %v2611
  %v2652 = vpop.f32.mrf.mxu0
  %v2653 = vadd.f32 0.0, %v2652
  %v2654 = vpop.f32.mrf.mxu0
  %v2655 = vadd.f32 0.0, %v2654
  %2656 = vmatmul.bf16.gmra.mxu0 %v2613
  %v2657 = vpop.f32.mrf.mxu0
  %v2658 = vadd.f32 0.0, %v2657
  %v2659 = vpop.f32.mrf.mxu0
  %v2660 = vadd.f32 0.0, %v2659
  %2661 = vmatmul.bf16.gmra.mxu0 %v2615
  %v2662 = vpop.f32.mrf.mxu0
  %v2663 = vadd.f32 0.0, %v2662
  %v2664 = vpop.f32.mrf.mxu0
  %v2665 = vadd.f32 0.0, %v2664
  %2666 = vmatmul.bf16.gmra.mxu0 %v2617
  %v2667 = vpop.f32.mrf.mxu0
  %v2668 = vadd.f32 0.0, %v2667
  %v2669 = vpop.f32.mrf.mxu0
  %v2670 = vadd.f32 0.0, %v2669
  %2671 = vdwg.mxu0
  %v2672 = vmax.f32 %v2633, 0.0
  %v2673 = vmax.f32 %v2635, 0.0
  %v2674 = vmax.f32 %v2638, 0.0
  %v2675 = vmax.f32 %v2640, 0.0
  %v2676 = vmax.f32 %v2643, 0.0
  %v2677 = vmax.f32 %v2645, 0.0
  %v2678 = vmax.f32 %v2648, 0.0
  %v2679 = vmax.f32 %v2650, 0.0
  %v2680 = vmax.f32 %v2653, 0.0
  %v2681 = vmax.f32 %v2655, 0.0
  %v2682 = vmax.f32 %v2658, 0.0
  %v2683 = vmax.f32 %v2660, 0.0
  %v2684 = vmax.f32 %v2663, 0.0
  %v2685 = vmax.f32 %v2665, 0.0
  %v2686 = vmax.f32 %v2668, 0.0
  %v2687 = vmax.f32 %v2670, 0.0
  %v2688 = vpack.c.bf16 %v2673, %v2672
  %v2689 = vpack.c.bf16 %v2675, %v2674
  %v2690 = vpack.c.bf16 %v2677, %v2676
  %v2691 = vpack.c.bf16 %v2679, %v2678
  %v2692 = vpack.c.bf16 %v2681, %v2680
  %v2693 = vpack.c.bf16 %v2683, %v2682
  %v2694 = vpack.c.bf16 %v2685, %v2684
  %v2695 = vpack.c.bf16 %v2687, %v2686
  %v2696 = vld [vmem:[%s4] sm:$0xf]
  %v2697 = vld [vmem:[%s4 + $0x4] sm:$0xf]
  %v2698 = vld [vmem:[%s4 + $0x8] sm:$0xf]
  %v2699 = vld [vmem:[%s4 + $0xc] sm:$0xf]
  %v2700 = vld [vmem:[%s4 + $0x10] sm:$0xf]
  %v2701 = vld [vmem:[%s4 + $0x14] sm:$0xf]
  %v2702 = vld [vmem:[%s4 + $0x18] sm:$0xf]
  %v2703 = vld [vmem:[%s4 + $0x1c] sm:$0xf]
  %v2704 = vld [vmem:[%s4 + $0x20] sm:$0xf]
  %v2705 = vld [vmem:[%s4 + $0x24] sm:$0xf]
  %v2706 = vld [vmem:[%s4 + $0x28] sm:$0xf]
  %v2707 = vld [vmem:[%s4 + $0x2c] sm:$0xf]
  %v2708 = vld [vmem:[%s4 + $0x30] sm:$0xf]
  %v2709 = vld [vmem:[%s4 + $0x34] sm:$0xf]
  %v2710 = vld [vmem:[%s4 + $0x38] sm:$0xf]
  %v2711 = vld [vmem:[%s5] sm:$0x1]
  %v2713 = vperm.slane %v2711, 0
  %v2730 = vunpack.c.l.b16 %v2696
  %v2731 = vunpack.c.l.b16 %v2697
  %v2732 = vunpack.c.l.b16 %v2698
  %v2733 = vunpack.c.l.b16 %v2699
  %v2734 = vunpack.c.l.b16 %v2700
  %v2735 = vunpack.c.l.b16 %v2701
  %v2736 = vunpack.c.l.b16 %v2702
  %v2737 = vunpack.c.l.b16 %v2703
  %v2738 = vunpack.c.l.b16 %v2704
  %v2739 = vunpack.c.l.b16 %v2705
  %v2740 = vunpack.c.l.b16 %v2706
  %v2741 = vunpack.c.l.b16 %v2707
  %v2742 = vunpack.c.l.b16 %v2708
  %v2743 = vunpack.c.l.b16 %v2709
  %v2744 = vunpack.c.l.b16 %v2710
  %v2745 = vpack.c.b16 %v2731, %v2730
  %v2746 = vpack.c.b16 %v2733, %v2732
  %v2747 = vpack.c.b16 %v2735, %v2734
  %v2748 = vpack.c.b16 %v2737, %v2736
  %v2749 = vpack.c.b16 %v2739, %v2738
  %v2750 = vpack.c.b16 %v2741, %v2740
  %v2751 = vpack.c.b16 %v2743, %v2742
  %v2752 = vpack.c.b16 %v2744, %v2744
  %vm2760 = vcmask 982016
  %v2762 = vsel %vm2760, %v2688, 0
  %v2765 = vsel %vm2760, %v2689, 0
  %v2768 = vsel %vm2760, %v2690, 0
  %v2771 = vsel %vm2760, %v2691, 0
  %v2774 = vsel %vm2760, %v2692, 0
  %v2777 = vsel %vm2760, %v2693, 0
  %v2780 = vsel %vm2760, %v2694, 0
  %v2783 = vsel %vm2760, %v2695, 0
  %vm2785 = vcmask 1043456
  %v2787 = vsel %vm2785, %v2752, 0
  %2789 = vmatpush.bf16.msra.mxu0 %v2787
  %2790 = vmatpush.bf16.msra.mxu0 %v2751
  %2791 = vmatpush.bf16.msra.mxu0 %v2750
  %2792 = vmatpush.bf16.msra.mxu0 %v2749
  %2793 = vmatpush.bf16.msra.mxu0 %v2748
  %2794 = vmatpush.bf16.msra.mxu0 %v2747
  %2795 = vmatpush.bf16.msra.mxu0 %v2746
  %2796 = vmatpush.bf16.msra.mxu0 %v2745
  %2797 = vmatmul.bf16.gmra.mxu0 %v2762
  %v2798 = vpop.f32.mrf.mxu0
  %v2799 = vadd.f32 %v2713, %v2798
  %v2800 = vpop.f32.mrf.mxu0
  %v2801 = vadd.f32 %v2713, %v2800
  %2802 = vmatmul.bf16.gmra.mxu0 %v2765
  %v2803 = vpop.f32.mrf.mxu0
  %v2804 = vadd.f32 %v2713, %v2803
  %v2805 = vpop.f32.mrf.mxu0
  %v2806 = vadd.f32 %v2713, %v2805
  %2807 = vmatmul.bf16.gmra.mxu0 %v2768
  %v2808 = vpop.f32.mrf.mxu0
  %v2809 = vadd.f32 %v2713, %v2808
  %v2810 = vpop.f32.mrf.mxu0
  %v2811 = vadd.f32 %v2713, %v2810
  %2812 = vmatmul.bf16.gmra.mxu0 %v2771
  %v2813 = vpop.f32.mrf.mxu0
  %v2814 = vadd.f32 %v2713, %v2813
  %v2815 = vpop.f32.mrf.mxu0
  %v2816 = vadd.f32 %v2713, %v2815
  %2817 = vmatmul.bf16.gmra.mxu0 %v2774
  %v2818 = vpop.f32.mrf.mxu0
  %v2819 = vadd.f32 %v2713, %v2818
  %v2820 = vpop.f32.mrf.mxu0
  %v2821 = vadd.f32 %v2713, %v2820
  %2822 = vmatmul.bf16.gmra.mxu0 %v2777
  %v2823 = vpop.f32.mrf.mxu0
  %v2824 = vadd.f32 %v2713, %v2823
  %v2825 = vpop.f32.mrf.mxu0
  %v2826 = vadd.f32 %v2713, %v2825
  %2827 = vmatmul.bf16.gmra.mxu0 %v2780
  %v2828 = vpop.f32.mrf.mxu0
  %v2829 = vadd.f32 %v2713, %v2828
  %v2830 = vpop.f32.mrf.mxu0
  %v2831 = vadd.f32 %v2713, %v2830
  %2832 = vmatmul.bf16.gmra.mxu0 %v2783
  %v2833 = vpop.f32.mrf.mxu0
  %v2834 = vadd.f32 %v2713, %v2833
  %v2835 = vpop.f32.mrf.mxu0
  %v2836 = vadd.f32 %v2713, %v2835
  %2837 = vdwg.mxu0
  %2838 = vst [vmem:[%s6] sm:$0xff] %v2799
  %2839 = vst [vmem:[%s6 + $0x8] sm:$0xff] %v2801
  %2840 = vst [vmem:[%s6 + $0x10] sm:$0xff] %v2804
  %2841 = vst [vmem:[%s6 + $0x18] sm:$0xff] %v2806
  %2842 = vst [vmem:[%s6 + $0x20] sm:$0xff] %v2809
  %2843 = vst [vmem:[%s6 + $0x28] sm:$0xff] %v2811
  %2844 = vst [vmem:[%s6 + $0x30] sm:$0xff] %v2814
  %2845 = vst [vmem:[%s6 + $0x38] sm:$0xff] %v2816
  %2846 = vst [vmem:[%s6 + $0x40] sm:$0xff] %v2819
  %2847 = vst [vmem:[%s6 + $0x48] sm:$0xff] %v2821
  %2848 = vst [vmem:[%s6 + $0x50] sm:$0xff] %v2824
  %2849 = vst [vmem:[%s6 + $0x58] sm:$0xff] %v2826
  %2850 = vst [vmem:[%s6 + $0x60] sm:$0xff] %v2829
  %2851 = vst [vmem:[%s6 + $0x68] sm:$0xff] %v2831
  %2852 = vst [vmem:[%s6 + $0x70] sm:$0xff] %v2834
  %2853 = vst [vmem:[%s6 + $0x78] sm:$0xff] %v2836
  // Predicated region
  $region26: #{ocr_header_forward.1} parent=0 // pred_check
    _
  $region27: #{ocr_header_forward.1} parent=0 // pred_check_branch
    %2855 = sbr.rel (0) target = $region29
  $region28: #{ocr_header_forward.1} parent=0 // pred_region
    _
  $region29: #{ocr_header_forward.1} parent=0 // pred_fallthru
    _
  // Predicated region
  $region30: #{ocr_header_forward.1} parent=0 // pred_check
    _
  $region31: #{ocr_header_forward.1} parent=0 // pred_check_branch
    %2857 = sbr.rel (0) target = $region33
  $region32: #{ocr_header_forward.1} parent=0 // pred_region
    _
  $region33: #{ocr_header_forward.1} parent=0 // pred_fallthru
    _

</llo_original>
